<compile_context>
chip_gen: v5e
topology: v5e:2x2
jax: 0.10.0
libtpu: 0.0.40
codegen_flags: <defaults>
</compile_context>

<pallas_src>
import functools

import jax
import jax.numpy as jnp
from jax.experimental import pallas as pl
from jax.experimental.pallas import tpu as pltpu

LANE = 128
SUBLANE_F32 = 8            # f32 sublane tile rows
SUBLANE_BF16 = 16          # bf16 packs 2 rows/sublane -> 16-row granularity


def _round_up(x, m):
    return ((x + m - 1) // m) * m


# ----------------------------------------------------------------------------
# Pallas kernel: fused MLP forward (one batch tile per grid step)
# ----------------------------------------------------------------------------
def _mlp_kernel(num_layers, lane_pack, *refs):
    """refs = (x_ref, bias_ref, w1_ref, ..., wN_ref, out_ref).

    x_ref    : (tb, input_dim)           f32 (raw, un-padded input tile)
    bias_ref : (num_layers, max_out_p)   f32 (packed, zero-padded, resident)
    w_i_ref  : (din_p_i, dout_p_i)       bf16 (zero-padded, resident)
    out_ref  : (8, tb) f32 lane-packed   OR  (tb, out_p_last) f32
    """
    x_ref = refs[0]
    b_ref = refs[1]
    w_refs = refs[2:2 + num_layers]
    out_ref = refs[2 + num_layers]

    # bf16 cast of the raw f32 input happens here (VPU), not in the wrapper.
    h = x_ref[...].astype(jnp.bfloat16)
    acc = None
    for i in range(num_layers):
        w = w_refs[i][...]                                   # (din_p, dout_p) bf16
        dout_p = w.shape[1]
        acc = jnp.dot(h, w, preferred_element_type=jnp.float32)   # MXU, f32 acc
        acc = acc + b_ref[i:i + 1, :dout_p]                        # bias (VPU, f32)
        if i < num_layers - 1:
            acc = jnp.maximum(acc, 0.0)                            # ReLU
            h = acc.astype(jnp.bfloat16)                           # back to bf16

    if lane_pack:
        # Lane-packed output: rows 0..out_dim-1 of the (8, tb) slab hold the
        # result (padded weight/bias columns beyond out_dim are exactly zero).
        out_ref[...] = acc[:, :SUBLANE_F32].T
    else:
        out_ref[...] = acc


# ----------------------------------------------------------------------------
# One-time parameter preparation (pad + cast hoisted out of the forward call)
# ----------------------------------------------------------------------------
def prepare_params(weights, biases):
    """weights: list of (in, out) f32 (y = x @ W); biases: list of (out,) f32."""
    num_layers = len(weights)
    dims_in = [w.shape[0] for w in weights]
    dims_out = [w.shape[1] for w in weights]
    # Layer 0 keeps its true input dim (x is fed raw / un-padded); all other
    # dims are zero-padded to 128 lanes for dense MXU tiles.
    dims_in_p = [dims_in[0]] + [_round_up(d, LANE) for d in dims_in[1:]]
    dims_out_p = [_round_up(d, LANE) for d in dims_out]
    max_out_p = max(dims_out_p)

    w_padded = []
    for w, dip, dop in zip(weights, dims_in_p, dims_out_p):
        wp = jnp.zeros((dip, dop), jnp.float32).at[:w.shape[0], :w.shape[1]].set(w)
        w_padded.append(wp.astype(jnp.bfloat16))

    b_packed = jnp.zeros((num_layers, max_out_p), jnp.float32)
    for i, b in enumerate(biases):
        b_packed = b_packed.at[i, :b.shape[0]].set(b)

    return {
        "w_padded": tuple(w_padded),
        "b_packed": b_packed,
        "dims_in": tuple(dims_in),
        "dims_out": tuple(dims_out),
        "dims_in_p": tuple(dims_in_p),
        "dims_out_p": tuple(dims_out_p),
        "max_out_p": max_out_p,
    }


# ----------------------------------------------------------------------------
# Fused XLA fallback for tiny batches (same bf16-matmul / f32-accumulate math)
# ----------------------------------------------------------------------------
def _mlp_xla(x, params):
    num_layers = len(params["w_padded"])
    h = x.astype(jnp.bfloat16)
    acc = None
    for i, w in enumerate(params["w_padded"]):
        dop = params["dims_out_p"][i]
        acc = jnp.dot(h, w, preferred_element_type=jnp.float32)
        acc = acc + params["b_packed"][i, :dop]
        if i < num_layers - 1:
            acc = jnp.maximum(acc, 0.0)
            h = acc.astype(jnp.bfloat16)
    return acc[:, :params["dims_out"][-1]]


# ----------------------------------------------------------------------------
# Generation-aware VMEM budget / tile cap
# ----------------------------------------------------------------------------
def _vmem_config():
    cap = None
    try:
        cap = getattr(pltpu.get_tpu_info(), "vmem_capacity_bytes", None)
    except Exception:
        cap = None
    if cap is None:
        cap = 64 * 1024 * 1024                      # assume smallest (v7x-like)
    if cap >= 100 * 1024 * 1024:                    # v5e / v6e: 128 MiB physical
        return 80 * 1024 * 1024, 100 * 1024 * 1024, 2048
    return 28 * 1024 * 1024, 48 * 1024 * 1024, 1024  # v7x: 64 MiB physical


# ----------------------------------------------------------------------------
# Forward wrapper
# ----------------------------------------------------------------------------
def mlp_forward(x, params, *, max_batch_tile=None, use_pallas=None):
    """x: (batch, input_dim) f32; params: from prepare_params()."""
    batch, input_dim = x.shape
    num_layers = len(params["w_padded"])
    assert input_dim == params["dims_in"][0], "input_dim mismatch"

    out_dim = params["dims_out"][-1]
    out_p_last = params["dims_out_p"][-1]
    dims_in_p = params["dims_in_p"]
    dims_out_p = params["dims_out_p"]
    max_out_p = params["max_out_p"]
    w_padded = params["w_padded"]
    b_packed = params["b_packed"]

    # Tiny batches: the kernel is pure fixed overhead there -> fused XLA path.
    if use_pallas is None:
        use_pallas = batch >= 1024
    if not use_pallas:
        return _mlp_xla(x, params)

    lane_pack = out_dim <= SUBLANE_F32

    # ---- batch-tile selection -------------------------------------------
    vmem_budget, vmem_limit, tile_cap = _vmem_config()
    if max_batch_tile is not None:
        tile_cap = max_batch_tile
    granule = LANE if lane_pack else SUBLANE_BF16
    # Target >= 2 tiles (megacore on v7x) without dropping below one granule.
    tb = min(tile_cap, max(granule, _round_up(pl.cdiv(batch, 2), granule)))
    tb = max(granule, _round_up(tb, granule))

    max_dim_p = max([input_dim] + list(dims_out_p))
    bytes_weights = sum(dip * dop * 2 for dip, dop in zip(dims_in_p, dims_out_p))
    bytes_bias = num_layers * max_out_p * 4

    def tile_bytes(t):
        x_tile = 2 * t * _round_up(input_dim, LANE) * 4       # dbl-buffered x (f32)
        out_tile = (2 * SUBLANE_F32 * t * 4 if lane_pack
                    else 2 * t * out_p_last * 4)               # dbl-buffered out
        live = t * max_dim_p * (2 + 4)                          # h (bf16) + acc (f32)
        return x_tile + out_tile + live

    while tb > granule and bytes_weights + bytes_bias + tile_bytes(tb) > vmem_budget:
        tb = max(granule, _round_up(tb // 2, granule))

    n_tiles = pl.cdiv(batch, tb)
    batch_p = n_tiles * tb
    grid = (n_tiles,)
    kernel = functools.partial(_mlp_kernel, num_layers, lane_pack)

    if lane_pack:
        out_shape = jax.ShapeDtypeStruct((SUBLANE_F32, batch_p), jnp.float32)
        out_specs = pl.BlockSpec((SUBLANE_F32, tb), lambda i: (0, i))
        bytes_out = SUBLANE_F32 * batch_p * 4
    else:
        out_shape = jax.ShapeDtypeStruct((batch_p, out_p_last), jnp.float32)
        out_specs = pl.BlockSpec((tb, out_p_last), lambda i: (i, 0))
        bytes_out = batch_p * out_p_last * 4

    flops = 2 * batch_p * sum(dip * dop for dip, dop in zip(dims_in_p, dims_out_p))
    cost = pl.CostEstimate(
        flops=flops, transcendentals=0,
        bytes_accessed=batch_p * input_dim * 4 + bytes_weights + bytes_bias + bytes_out)

    def call(single_buffer_params):
        pm = pl.Buffered(1) if single_buffer_params else None

        def invariant_spec(shape):
            if pm is None:
                return pl.BlockSpec(shape, lambda i: (0, 0))
            return pl.BlockSpec(shape, lambda i: (0, 0), pipeline_mode=pm)

        in_specs = [pl.BlockSpec((tb, input_dim), lambda i: (i, 0)),     # raw x tile
                    invariant_spec((num_layers, max_out_p))]             # packed bias
        in_specs += [invariant_spec((dip, dop))                          # weights
                     for dip, dop in zip(dims_in_p, dims_out_p)]

        return pl.pallas_call(
            kernel,
            out_shape=out_shape,
            grid=grid,
            in_specs=in_specs,
            out_specs=out_specs,
            compiler_params=pltpu.CompilerParams(
                dimension_semantics=("parallel",),        # 2x on v7x (2 TC/chip)
                vmem_limit_bytes=vmem_limit),
            cost_estimate=cost,
        )(x, b_packed, *w_padded)

    try:
        out_full = call(True)
    except Exception:
        # TODO(synk): pl.Buffered(1) single-buffering of grid-invariant operands
        # is only a VMEM-saving hint; fall back to default double-buffering if
        # this Pallas build rejects it.
        out_full = call(False)

    if lane_pack:
        return out_full[:out_dim, :batch].T               # (batch, out_dim)
    return out_full[:batch, :out_dim]


# ----------------------------------------------------------------------------
# Deterministic parameter init (mirrors nn.init.orthogonal_ + zero bias)
# ----------------------------------------------------------------------------
def orthogonal_init(key, out_dim, in_dim):
    a = jax.random.normal(key, (out_dim, in_dim), dtype=jnp.float32)
    transpose = out_dim < in_dim
    if transpose:
        a = a.T
    q, r = jnp.linalg.qr(a)
    d = jnp.sign(jnp.diag(r))
    q = q * d[None, :]
    if transpose:
        q = q.T
    return q                                               # (out_dim, in_dim)


def build_network_params(key, layer_num, input_dim, output_dim, hidden_dim):
    """Replicates Network.__init__ layer structure and init."""
    layers_unit = [input_dim] + [hidden_dim] * (layer_num - 1)
    dims = list(zip(layers_unit[:-1], layers_unit[1:])) + [(layers_unit[-1], output_dim)]

    weights_t = []                                         # (in, out): y = x @ W
    biases = []
    for (in_d, out_d) in dims:
        key, sub = jax.random.split(key)
        w = orthogonal_init(sub, out_d, in_d)              # PyTorch layout (out, in)
        weights_t.append(jnp.asarray(w.T))                 # -> (in, out)
        biases.append(jnp.zeros((out_d,), jnp.float32))
    return weights_t, biases


# ----------------------------------------------------------------------------
# Pure-JAX reference matching the kernel's bf16-input / f32-accumulate math
# ----------------------------------------------------------------------------
def mlp_reference_bf16(x, weights, biases):
    h = x.astype(jnp.bfloat16).astype(jnp.float32)
    n = len(weights)
    for i, (w, b) in enumerate(zip(weights, biases)):
        wf = w.astype(jnp.bfloat16).astype(jnp.float32)
        h = jnp.dot(h, wf, precision=jax.lax.Precision.HIGHEST) + b
        if i < n - 1:
            h = jnp.maximum(h, 0.0).astype(jnp.bfloat16).astype(jnp.float32)
    return h


if __name__ == "__main__":
    # Network(layer_num=3, input_dim=32, output_dim=1, hidden_dim=32) applied to
    # a (batch, input_dim) tensor; batch=256 so the Pallas grid has 2 tiles.
    layer_num, input_dim, output_dim, hidden_dim = 3, 32, 1, 32
    batch = 256

    key = jax.random.PRNGKey(0)
    key, k_x = jax.random.split(key)
    x = jax.random.normal(k_x, (batch, input_dim), dtype=jnp.float32)

    weights, biases = build_network_params(key, layer_num, input_dim, output_dim, hidden_dim)
    params = prepare_params(weights, biases)               # pad + cast once

    # Pallas path (forced so the kernel is exercised at this small batch).
    out = mlp_forward(x, params, use_pallas=True)
    out = jax.block_until_ready(out)
    ref = mlp_reference_bf16(x, weights, biases)
    assert out.shape == (batch, output_dim), out.shape
    assert jnp.allclose(out, ref, atol=1e-3, rtol=1e-3), "pallas mismatch vs reference"

    # Auto path: tiny batches take the fused-XLA fallback (same math).
    out_small = jax.block_until_ready(mlp_forward(x[:8], params))
    assert jnp.allclose(out_small, ref[:8], atol=1e-3, rtol=1e-3), "fallback mismatch"

    print("KERNEL_OK")
</pallas_src>

<mosaic_0001>
module attributes {stable_mosaic.version = 11 : i64} {
  func.func @_mlp_kernel(%arg0: i32, %arg1: memref<128x32xf32, #tpu.memory_space<vmem>>, %arg2: memref<3x128xf32, #tpu.memory_space<vmem>>, %arg3: memref<32x128xbf16, #tpu.memory_space<vmem>>, %arg4: memref<128x128xbf16, #tpu.memory_space<vmem>>, %arg5: memref<128x128xbf16, #tpu.memory_space<vmem>>, %arg6: memref<8x128xf32, #tpu.memory_space<vmem>>) attributes {dimension_semantics = [#tpu.dimension_semantics<parallel>], iteration_bounds = array<i64: 2>, scalar_prefetch = 0 : i64, scratch_operands = 0 : i64, tpu.core_type = #tpu.core_type<tc>, window_params = [{transform_indices = @transform_0, window_bounds = array<i64: 128, 32>}, {pipeline_mode = #tpu.pipeline_mode<synchronous>, transform_indices = @transform_1, window_bounds = array<i64: 3, 128>}, {pipeline_mode = #tpu.pipeline_mode<synchronous>, transform_indices = @transform_2, window_bounds = array<i64: 32, 128>}, {pipeline_mode = #tpu.pipeline_mode<synchronous>, transform_indices = @transform_3, window_bounds = array<i64: 128, 128>}, {pipeline_mode = #tpu.pipeline_mode<synchronous>, transform_indices = @transform_4, window_bounds = array<i64: 128, 128>}, {transform_indices = @transform_5, window_bounds = array<i64: 8, 128>}]} {
    %c0 = arith.constant 0 : index
    %c0_0 = arith.constant 0 : index
    %0 = vector.load %arg1[%c0, %c0_0] : memref<128x32xf32, #tpu.memory_space<vmem>>, vector<128x32xf32>
    %1 = arith.truncf %0 : vector<128x32xf32> to vector<128x32xbf16>
    %c0_1 = arith.constant 0 : index
    %c0_2 = arith.constant 0 : index
    %2 = vector.load %arg3[%c0_1, %c0_2] : memref<32x128xbf16, #tpu.memory_space<vmem>>, vector<32x128xbf16>
    %cst = arith.constant dense<0.000000e+00> : vector<128x128xf32>
    %3 = tpu.matmul %1, %2, %cst {dimension_numbers = #tpu.dot_dimension_numbers<[1], [0], [0], [1], [0, 0, 1, 1], [], []>} : vector<128x32xbf16>, vector<32x128xbf16>, vector<128x128xf32> -> vector<128x128xf32>
    %c0_3 = arith.constant 0 : index
    %c0_4 = arith.constant 0 : index
    %4 = vector.load %arg2[%c0_3, %c0_4] : memref<3x128xf32, #tpu.memory_space<vmem>>, vector<1x128xf32>
    %5 = vector.broadcast %4 : vector<1x128xf32> to vector<128x128xf32>
    %6 = arith.addf %3, %5 : vector<128x128xf32>
    %cst_5 = arith.constant 0.000000e+00 : f32
    %7 = vector.broadcast %cst_5 : f32 to vector<128x128xf32>
    %8 = arith.maximumf %6, %7 : vector<128x128xf32>
    %9 = arith.truncf %8 : vector<128x128xf32> to vector<128x128xbf16>
    %c0_6 = arith.constant 0 : index
    %c0_7 = arith.constant 0 : index
    %10 = vector.load %arg4[%c0_6, %c0_7] : memref<128x128xbf16, #tpu.memory_space<vmem>>, vector<128x128xbf16>
    %cst_8 = arith.constant dense<0.000000e+00> : vector<128x128xf32>
    %11 = tpu.matmul %9, %10, %cst_8 {dimension_numbers = #tpu.dot_dimension_numbers<[1], [0], [0], [1], [0, 0, 1, 1], [], []>} : vector<128x128xbf16>, vector<128x128xbf16>, vector<128x128xf32> -> vector<128x128xf32>
    %c1 = arith.constant 1 : index
    %c0_9 = arith.constant 0 : index
    %12 = vector.load %arg2[%c1, %c0_9] : memref<3x128xf32, #tpu.memory_space<vmem>>, vector<1x128xf32>
    %13 = vector.broadcast %12 : vector<1x128xf32> to vector<128x128xf32>
    %14 = arith.addf %11, %13 : vector<128x128xf32>
    %cst_10 = arith.constant 0.000000e+00 : f32
    %15 = vector.broadcast %cst_10 : f32 to vector<128x128xf32>
    %16 = arith.maximumf %14, %15 : vector<128x128xf32>
    %17 = arith.truncf %16 : vector<128x128xf32> to vector<128x128xbf16>
    %c0_11 = arith.constant 0 : index
    %c0_12 = arith.constant 0 : index
    %18 = vector.load %arg5[%c0_11, %c0_12] : memref<128x128xbf16, #tpu.memory_space<vmem>>, vector<128x128xbf16>
    %cst_13 = arith.constant dense<0.000000e+00> : vector<128x128xf32>
    %19 = tpu.matmul %17, %18, %cst_13 {dimension_numbers = #tpu.dot_dimension_numbers<[1], [0], [0], [1], [0, 0, 1, 1], [], []>} : vector<128x128xbf16>, vector<128x128xbf16>, vector<128x128xf32> -> vector<128x128xf32>
    %c2 = arith.constant 2 : index
    %c0_14 = arith.constant 0 : index
    %20 = vector.load %arg2[%c2, %c0_14] : memref<3x128xf32, #tpu.memory_space<vmem>>, vector<1x128xf32>
    %21 = vector.broadcast %20 : vector<1x128xf32> to vector<128x128xf32>
    %22 = arith.addf %19, %21 : vector<128x128xf32>
    %23 = vector.extract_strided_slice %22 {offsets = [0, 0], sizes = [128, 8], strides = [1, 1]} : vector<128x128xf32> to vector<128x8xf32>
    %24 = tpu.transpose %23, [1, 0] : vector<128x8xf32> -> vector<8x128xf32>
    %c0_15 = arith.constant 0 : index
    %c0_16 = arith.constant 0 : index
    %25 = vector.load %arg6[%c0_15, %c0_16] : memref<8x128xf32, #tpu.memory_space<vmem>>, vector<8x128xf32>
    tpu.vector_store %arg6[%c0_15, %c0_16], %24 {strides = array<i32>} : memref<8x128xf32, #tpu.memory_space<vmem>>, vector<8x128xf32>,
    return
  }
  func.func @transform_0(%arg0: i32) -> (i32, i32) {
    %c0_i32 = arith.constant 0 : i32
    %c0_i32_0 = arith.constant 0 : i32
    return %arg0, %c0_i32 : i32, i32
  }
  func.func @transform_1(%arg0: i32) -> (i32, i32) {
    %c0_i32 = arith.constant 0 : i32
    %c0_i32_0 = arith.constant 0 : i32
    %c0_i32_1 = arith.constant 0 : i32
    return %c0_i32, %c0_i32_0 : i32, i32
  }
  func.func @transform_2(%arg0: i32) -> (i32, i32) {
    %c0_i32 = arith.constant 0 : i32
    %c0_i32_0 = arith.constant 0 : i32
    %c0_i32_1 = arith.constant 0 : i32
    return %c0_i32, %c0_i32_0 : i32, i32
  }
  func.func @transform_3(%arg0: i32) -> (i32, i32) {
    %c0_i32 = arith.constant 0 : i32
    %c0_i32_0 = arith.constant 0 : i32
    %c0_i32_1 = arith.constant 0 : i32
    return %c0_i32, %c0_i32_0 : i32, i32
  }
  func.func @transform_4(%arg0: i32) -> (i32, i32) {
    %c0_i32 = arith.constant 0 : i32
    %c0_i32_0 = arith.constant 0 : i32
    %c0_i32_1 = arith.constant 0 : i32
    return %c0_i32, %c0_i32_0 : i32, i32
  }
  func.func @transform_5(%arg0: i32) -> (i32, i32) {
    %c0_i32 = arith.constant 0 : i32
    %c0_i32_0 = arith.constant 0 : i32
    return %c0_i32, %arg0 : i32, i32
  }
}

module attributes {stable_mosaic.version = 11 : i64} {
  func.func @_mlp_kernel(%arg0: i32, %arg1: memref<128x32xf32, #tpu.memory_space<vmem>>, %arg2: memref<3x128xf32, #tpu.memory_space<vmem>>, %arg3: memref<32x128xbf16, #tpu.memory_space<vmem>>, %arg4: memref<128x128xbf16, #tpu.memory_space<vmem>>, %arg5: memref<128x128xbf16, #tpu.memory_space<vmem>>, %arg6: memref<8x128xf32, #tpu.memory_space<vmem>>) attributes {dimension_semantics = [#tpu.dimension_semantics<parallel>], iteration_bounds = array<i64: 2>, scalar_prefetch = 0 : i64, scratch_operands = 0 : i64, tpu.core_type = #tpu.core_type<tc>, window_params = [{transform_indices = @transform_0, window_bounds = array<i64: 128, 32>}, {pipeline_mode = #tpu.pipeline_mode<synchronous>, transform_indices = @transform_1, window_bounds = array<i64: 3, 128>}, {pipeline_mode = #tpu.pipeline_mode<synchronous>, transform_indices = @transform_2, window_bounds = array<i64: 32, 128>}, {pipeline_mode = #tpu.pipeline_mode<synchronous>, transform_indices = @transform_3, window_bounds = array<i64: 128, 128>}, {pipeline_mode = #tpu.pipeline_mode<synchronous>, transform_indices = @transform_4, window_bounds = array<i64: 128, 128>}, {transform_indices = @transform_5, window_bounds = array<i64: 8, 128>}]} {
    %c0 = arith.constant 0 : index
    %c0_0 = arith.constant 0 : index
    %0 = vector.load %arg1[%c0, %c0_0] : memref<128x32xf32, #tpu.memory_space<vmem>>, vector<128x32xf32>
    %1 = arith.truncf %0 : vector<128x32xf32> to vector<128x32xbf16>
    %c0_1 = arith.constant 0 : index
    %c0_2 = arith.constant 0 : index
    %2 = vector.load %arg3[%c0_1, %c0_2] : memref<32x128xbf16, #tpu.memory_space<vmem>>, vector<32x128xbf16>
    %cst = arith.constant dense<0.000000e+00> : vector<128x128xf32>
    %3 = tpu.matmul %1, %2, %cst {dimension_numbers = #tpu.dot_dimension_numbers<[1], [0], [0], [1], [0, 0, 1, 1], [], []>} : vector<128x32xbf16>, vector<32x128xbf16>, vector<128x128xf32> -> vector<128x128xf32>
    %c0_3 = arith.constant 0 : index
    %c0_4 = arith.constant 0 : index
    %4 = vector.load %arg2[%c0_3, %c0_4] : memref<3x128xf32, #tpu.memory_space<vmem>>, vector<1x128xf32>
    %5 = vector.broadcast %4 : vector<1x128xf32> to vector<128x128xf32>
    %6 = arith.addf %3, %5 : vector<128x128xf32>
    %cst_5 = arith.constant 0.000000e+00 : f32
    %7 = vector.broadcast %cst_5 : f32 to vector<128x128xf32>
    %8 = arith.maximumf %6, %7 : vector<128x128xf32>
    %9 = arith.truncf %8 : vector<128x128xf32> to vector<128x128xbf16>
    %c0_6 = arith.constant 0 : index
    %c0_7 = arith.constant 0 : index
    %10 = vector.load %arg4[%c0_6, %c0_7] : memref<128x128xbf16, #tpu.memory_space<vmem>>, vector<128x128xbf16>
    %cst_8 = arith.constant dense<0.000000e+00> : vector<128x128xf32>
    %11 = tpu.matmul %9, %10, %cst_8 {dimension_numbers = #tpu.dot_dimension_numbers<[1], [0], [0], [1], [0, 0, 1, 1], [], []>} : vector<128x128xbf16>, vector<128x128xbf16>, vector<128x128xf32> -> vector<128x128xf32>
    %c1 = arith.constant 1 : index
    %c0_9 = arith.constant 0 : index
    %12 = vector.load %arg2[%c1, %c0_9] : memref<3x128xf32, #tpu.memory_space<vmem>>, vector<1x128xf32>
    %13 = vector.broadcast %12 : vector<1x128xf32> to vector<128x128xf32>
    %14 = arith.addf %11, %13 : vector<128x128xf32>
    %cst_10 = arith.constant 0.000000e+00 : f32
    %15 = vector.broadcast %cst_10 : f32 to vector<128x128xf32>
    %16 = arith.maximumf %14, %15 : vector<128x128xf32>
    %17 = arith.truncf %16 : vector<128x128xf32> to vector<128x128xbf16>
    %c0_11 = arith.constant 0 : index
    %c0_12 = arith.constant 0 : index
    %18 = vector.load %arg5[%c0_11, %c0_12] : memref<128x128xbf16, #tpu.memory_space<vmem>>, vector<128x128xbf16>
    %cst_13 = arith.constant dense<0.000000e+00> : vector<128x128xf32>
    %19 = tpu.matmul %17, %18, %cst_13 {dimension_numbers = #tpu.dot_dimension_numbers<[1], [0], [0], [1], [0, 0, 1, 1], [], []>} : vector<128x128xbf16>, vector<128x128xbf16>, vector<128x128xf32> -> vector<128x128xf32>
    %c2 = arith.constant 2 : index
    %c0_14 = arith.constant 0 : index
    %20 = vector.load %arg2[%c2, %c0_14] : memref<3x128xf32, #tpu.memory_space<vmem>>, vector<1x128xf32>
    %21 = vector.broadcast %20 : vector<1x128xf32> to vector<128x128xf32>
    %22 = arith.addf %19, %21 : vector<128x128xf32>
    %23 = vector.extract_strided_slice %22 {offsets = [0, 0], sizes = [128, 8], strides = [1, 1]} : vector<128x128xf32> to vector<128x8xf32>
    %24 = tpu.transpose %23, [1, 0] : vector<128x8xf32> -> vector<8x128xf32>
    %c0_15 = arith.constant 0 : index
    %c0_16 = arith.constant 0 : index
    %25 = vector.load %arg6[%c0_15, %c0_16] : memref<8x128xf32, #tpu.memory_space<vmem>>, vector<8x128xf32>
    tpu.vector_store %arg6[%c0_15, %c0_16], %24 {strides = array<i32>} : memref<8x128xf32, #tpu.memory_space<vmem>>, vector<8x128xf32>,
    return
  }
  func.func @transform_0(%arg0: i32) -> (i32, i32) {
    %c0_i32 = arith.constant 0 : i32
    %c0_i32_0 = arith.constant 0 : i32
    return %arg0, %c0_i32 : i32, i32
  }
  func.func @transform_1(%arg0: i32) -> (i32, i32) {
    %c0_i32 = arith.constant 0 : i32
    %c0_i32_0 = arith.constant 0 : i32
    %c0_i32_1 = arith.constant 0 : i32
    return %c0_i32, %c0_i32_0 : i32, i32
  }
  func.func @transform_2(%arg0: i32) -> (i32, i32) {
    %c0_i32 = arith.constant 0 : i32
    %c0_i32_0 = arith.constant 0 : i32
    %c0_i32_1 = arith.constant 0 : i32
    return %c0_i32, %c0_i32_0 : i32, i32
  }
  func.func @transform_3(%arg0: i32) -> (i32, i32) {
    %c0_i32 = arith.constant 0 : i32
    %c0_i32_0 = arith.constant 0 : i32
    %c0_i32_1 = arith.constant 0 : i32
    return %c0_i32, %c0_i32_0 : i32, i32
  }
  func.func @transform_4(%arg0: i32) -> (i32, i32) {
    %c0_i32 = arith.constant 0 : i32
    %c0_i32_0 = arith.constant 0 : i32
    %c0_i32_1 = arith.constant 0 : i32
    return %c0_i32, %c0_i32_0 : i32, i32
  }
  func.func @transform_5(%arg0: i32) -> (i32, i32) {
    %c0_i32 = arith.constant 0 : i32
    %c0_i32_0 = arith.constant 0 : i32
    return %c0_i32, %arg0 : i32, i32
  }
}

</mosaic_0001>

<llo_original>
// kernel: tpu_custom_call.1
$region0: #{tpu_custom_call.1}
  #allocation0 [shape = 'u32[]', space=smem, size = 0x4, offset = 0x4, fixed_abs, tag = 'smem constant byte address 0x4 - core index']
  #allocation1 [shape = 'u32[72,128]{1,0:T(1,128)}', space=vmem, size = 0x9000, scoped, tag = 'internal scratch']
  %s0 = inlined_call_operand.vmem [shape: f32[256,32], index: 0, kind: input, shape index: {}]
  %s1 = inlined_call_operand.vmem [shape: f32[3,128], index: 1, kind: input, shape index: {}]
  %s2 = inlined_call_operand.vmem [shape: bf16[32,128], index: 2, kind: input, shape index: {}]
  %s3 = inlined_call_operand.vmem [shape: bf16[128,128], index: 3, kind: input, shape index: {}]
  %s4 = inlined_call_operand.vmem [shape: bf16[128,128], index: 4, kind: input, shape index: {}]
  %s5 = inlined_call_operand.hbm [shape: f32[8,256], index: 5, kind: output, shape index: {}]
  %s6 = sld [smem:[#allocation0]]
  $region53: #{tpu_custom_call.1} parent=0
    _
  %s8 = ssub.s32 1, %s6
  %s9 = scalar_select 0, %s8, %s6
  $region1: #{tpu_custom_call.1} parent=0
    #allocation2 [shape = 'u8[8192]{0}', space=vmem, size = 0x2000, scoped, tag = 'output window, operand 0']
    #allocation3 [shape = 's32[2]{0}', space=sflag, size = 0x8, scoped, tag = 'scoped memory for tpu_custom_call.1']
    %10 = vsyncpa [#allocation3], 0
    %s11 = scalar_lea.sflag [#allocation3], 1
    %12 = vsyncpa %s11, 0
    loop: start=0, step=1, limit=4
    $region2: #{tpu_custom_call.1} parent=1 // loop_pre_header
      _
    $region3: #{tpu_custom_call.1} parent=1 // loop_header
      %s14 = sphi 0, %s18
      %p15 = scmp.ge.s32.totalorder %s14, 4
      %s24 = sphi 0, %s26
      %s27 = sphi 0, %s24
      %s28 = sphi 0, %s27
      %s44 = sphi 0, %s28
      %s48 = sphi 0, %s48
      %s50 = sphi 0, %s48
      %s51 = sphi 0, %s50
      %s65 = sphi 0, %s51
      %s69 = sphi 0, %s69
      %s71 = sphi 0, %s69
      %s72 = sphi 0, %s71
      %s86 = sphi 0, %s72
      %s90 = sphi 0, %s90
      %s92 = sphi 0, %s90
      %s93 = sphi 0, %s92
      %s107 = sphi 0, %s93
      %s111 = sphi 0, %s111
      %s113 = sphi 0, %s111
      %s114 = sphi 0, %s113
      %s128 = sphi 0, %s114
      %s134 = sphi 0, %s136
      %s137 = sphi 0, %s134
      %s138 = sphi 0, %s137
      %s154 = sphi 0, %s138
    $region4: #{tpu_custom_call.1} parent=1 // loop_header_branch
      %17 = sbr.rel (%p15) target = $region8
    $region5: #{tpu_custom_call.1} parent=1 // loop_body
      %s19 = ssub.s32 %s14, 1
      %s20 = ssub.s32 %s14, 2
      %s21 = sadd.s32 %s14, 1
      %s22 = ssub.s32 %s14, %s21
      %p23 = scmp.eq.s32.totalorder %s22, 0
      %s25 = sadd.s32 %s24, 1
      %s26 = scalar_select %p23, %s24, %s25
      %p29 = pneg %p23
      %p30 = scmp.eq.s32.totalorder %s14, 1
      %p31 = por %p29, %p30
      %p32 = scmp.ne.s32.totalorder %s24, %s27
      %p33 = scmp.eq.s32.totalorder %s14, 0
      %p34 = por %p32, %p33
      %p35 = scmp.ne.s32.totalorder %s24, %s27
      %p36 = scmp.eq.s32.totalorder %s19, 1
      %p37 = por %p35, %p36
      %p38 = scmp.ne.s32.totalorder %s27, %s28
      %p39 = scmp.eq.s32.totalorder %s19, 0
      %p40 = por %p38, %p39
      %p41 = scmp.ne.s32.totalorder %s27, %s28
      %p42 = scmp.eq.s32.totalorder %s20, 1
      %p43 = por %p41, %p42
      %p45 = scmp.ne.s32.totalorder %s28, %s44
      %p46 = scmp.eq.s32.totalorder %s20, 0
      %p47 = por %p45, %p46
      %s49 = sadd.s32 %s48, 1
      %p52 = scmp.eq.s32.totalorder %s14, 1
      %p53 = scmp.ne.s32.totalorder %s48, %s50
      %p54 = scmp.eq.s32.totalorder %s14, 0
      %p55 = por %p53, %p54
      %p56 = scmp.ne.s32.totalorder %s48, %s50
      %p57 = scmp.eq.s32.totalorder %s19, 1
      %p58 = por %p56, %p57
      %p59 = scmp.ne.s32.totalorder %s50, %s51
      %p60 = scmp.eq.s32.totalorder %s19, 0
      %p61 = por %p59, %p60
      %p62 = scmp.ne.s32.totalorder %s50, %s51
      %p63 = scmp.eq.s32.totalorder %s20, 1
      %p64 = por %p62, %p63
      %p66 = scmp.ne.s32.totalorder %s51, %s65
      %p67 = scmp.eq.s32.totalorder %s20, 0
      %p68 = por %p66, %p67
      %s70 = sadd.s32 %s69, 1
      %p73 = scmp.eq.s32.totalorder %s14, 1
      %p74 = scmp.ne.s32.totalorder %s69, %s71
      %p75 = scmp.eq.s32.totalorder %s14, 0
      %p76 = por %p74, %p75
      %p77 = scmp.ne.s32.totalorder %s69, %s71
      %p78 = scmp.eq.s32.totalorder %s19, 1
      %p79 = por %p77, %p78
      %p80 = scmp.ne.s32.totalorder %s71, %s72
      %p81 = scmp.eq.s32.totalorder %s19, 0
      %p82 = por %p80, %p81
      %p83 = scmp.ne.s32.totalorder %s71, %s72
      %p84 = scmp.eq.s32.totalorder %s20, 1
      %p85 = por %p83, %p84
      %p87 = scmp.ne.s32.totalorder %s72, %s86
      %p88 = scmp.eq.s32.totalorder %s20, 0
      %p89 = por %p87, %p88
      %s91 = sadd.s32 %s90, 1
      %p94 = scmp.eq.s32.totalorder %s14, 1
      %p95 = scmp.ne.s32.totalorder %s90, %s92
      %p96 = scmp.eq.s32.totalorder %s14, 0
      %p97 = por %p95, %p96
      %p98 = scmp.ne.s32.totalorder %s90, %s92
      %p99 = scmp.eq.s32.totalorder %s19, 1
      %p100 = por %p98, %p99
      %p101 = scmp.ne.s32.totalorder %s92, %s93
      %p102 = scmp.eq.s32.totalorder %s19, 0
      %p103 = por %p101, %p102
      %p104 = scmp.ne.s32.totalorder %s92, %s93
      %p105 = scmp.eq.s32.totalorder %s20, 1
      %p106 = por %p104, %p105
      %p108 = scmp.ne.s32.totalorder %s93, %s107
      %p109 = scmp.eq.s32.totalorder %s20, 0
      %p110 = por %p108, %p109
      %s112 = sadd.s32 %s111, 1
      %p115 = scmp.eq.s32.totalorder %s14, 1
      %p116 = scmp.ne.s32.totalorder %s111, %s113
      %p117 = scmp.eq.s32.totalorder %s14, 0
      %p118 = por %p116, %p117
      %p119 = scmp.ne.s32.totalorder %s111, %s113
      %p120 = scmp.eq.s32.totalorder %s19, 1
      %p121 = por %p119, %p120
      %p122 = scmp.ne.s32.totalorder %s113, %s114
      %p123 = scmp.eq.s32.totalorder %s19, 0
      %p124 = por %p122, %p123
      %p125 = scmp.ne.s32.totalorder %s113, %s114
      %p126 = scmp.eq.s32.totalorder %s20, 1
      %p127 = por %p125, %p126
      %p129 = scmp.ne.s32.totalorder %s114, %s128
      %p130 = scmp.eq.s32.totalorder %s20, 0
      %p131 = por %p129, %p130
      %s132 = ssub.s32 %s14, %s21
      %p133 = scmp.eq.s32.totalorder %s132, 0
      %s135 = sadd.s32 %s134, 1
      %s136 = scalar_select %p133, %s134, %s135
      %p139 = pneg %p133
      %p140 = scmp.eq.s32.totalorder %s14, 1
      %p141 = por %p139, %p140
      %p142 = scmp.ne.s32.totalorder %s134, %s137
      %p143 = scmp.eq.s32.totalorder %s14, 0
      %p144 = por %p142, %p143
      %p145 = scmp.ne.s32.totalorder %s134, %s137
      %p146 = scmp.eq.s32.totalorder %s19, 1
      %p147 = por %p145, %p146
      %p148 = scmp.ne.s32.totalorder %s137, %s138
      %p149 = scmp.eq.s32.totalorder %s19, 0
      %p150 = por %p148, %p149
      %p151 = scmp.ne.s32.totalorder %s137, %s138
      %p152 = scmp.eq.s32.totalorder %s20, 1
      %p153 = por %p151, %p152
      %p155 = scmp.ne.s32.totalorder %s138, %s154
      %p156 = scmp.eq.s32.totalorder %s20, 0
      %p157 = por %p155, %p156
      %p158 = scmp.le.s32.totalorder 1, %s14
      %p159 = scmp.lt.s32.totalorder %s14, 3
      %p160 = pnand %p158, %p159
      %p161 = pneg %p160
      // Predicated region
      $region9: #{tpu_custom_call.1} parent=5 // pred_check
        _
      $region10: #{tpu_custom_call.1} parent=5 // pred_check_branch
        %163 = sbr.rel (%p160) target = $region12
      $region11: #{tpu_custom_call.1} parent=5 // pred_region
        %s164 = ssub.s32 %s14, 1
        // Predicated region
        $region13: #{tpu_custom_call.1} parent=11 // pred_check
          %p165 = pneg %p61
        $region14: #{tpu_custom_call.1} parent=11 // pred_check_branch
          %167 = sbr.rel (%p165) target = $region16
        $region15: #{tpu_custom_call.1} parent=11 // pred_region
          _
        $region16: #{tpu_custom_call.1} parent=11 // pred_fallthru
          _
        // Predicated region
        $region17: #{tpu_custom_call.1} parent=11 // pred_check
          %p168 = pneg %p82
        $region18: #{tpu_custom_call.1} parent=11 // pred_check_branch
          %170 = sbr.rel (%p168) target = $region20
        $region19: #{tpu_custom_call.1} parent=11 // pred_region
          _
        $region20: #{tpu_custom_call.1} parent=11 // pred_fallthru
          _
        // Predicated region
        $region21: #{tpu_custom_call.1} parent=11 // pred_check
          %p171 = pneg %p103
        $region22: #{tpu_custom_call.1} parent=11 // pred_check_branch
          %173 = sbr.rel (%p171) target = $region24
        $region23: #{tpu_custom_call.1} parent=11 // pred_region
          _
        $region24: #{tpu_custom_call.1} parent=11 // pred_fallthru
          _
        // Predicated region
        $region25: #{tpu_custom_call.1} parent=11 // pred_check
          %p174 = pneg %p124
        $region26: #{tpu_custom_call.1} parent=11 // pred_check_branch
          %176 = sbr.rel (%p174) target = $region28
        $region27: #{tpu_custom_call.1} parent=11 // pred_region
          _
        $region28: #{tpu_custom_call.1} parent=11 // pred_fallthru
          _
      $region12: #{tpu_custom_call.1} parent=5 // pred_fallthru
        _
      %p177 = scmp.lt.s32.totalorder %s14, 2
      // Predicated region
      $region29: #{tpu_custom_call.1} parent=5 // pred_check
        %p178 = pneg %p177
      $region30: #{tpu_custom_call.1} parent=5 // pred_check_branch
        %180 = sbr.rel (%p178) target = $region32
      $region31: #{tpu_custom_call.1} parent=5 // pred_region
        // Predicated region
        $region33: #{tpu_custom_call.1} parent=31 // pred_check
          %p181 = pneg %p34
        $region34: #{tpu_custom_call.1} parent=31 // pred_check_branch
          %183 = sbr.rel (%p181) target = $region36
        $region35: #{tpu_custom_call.1} parent=31 // pred_region
          %s184 = smul.u32 16, %s14
          %p185 = scmp.lt.s32.totalorder %s184, 31
          %s186 = scalar_select %p185, %s184, 31
          %s187 = smul.addr %s186, 8
          %s188 = scalar_lea.vmem %s0, %s187
          %s189 = smul.u32 16, %s14
        $region36: #{tpu_custom_call.1} parent=31 // pred_fallthru
          _
      $region32: #{tpu_custom_call.1} parent=5 // pred_fallthru
        _
      %p190 = scmp.le.s32.totalorder 1, %s14
      %p191 = scmp.lt.s32.totalorder %s14, 3
      %p192 = pnand %p190, %p191
      %p193 = pneg %p192
      // Predicated region
      $region37: #{tpu_custom_call.1} parent=5 // pred_check
        _
      $region38: #{tpu_custom_call.1} parent=5 // pred_check_branch
        %195 = sbr.rel (%p192) target = $region40
      $region39: #{tpu_custom_call.1} parent=5 // pred_region
        %s196 = ssub.s32 %s14, 1
        %s197 = smul.u32 16, %s19
        %p198 = scmp.lt.s32.totalorder %s197, 31
        %s199 = scalar_select %p198, %s197, 31
        %s200 = smul.addr %s199, 8
        %s201 = scalar_lea.vmem %s0, %s200
        %p202 = pneg %p40
        %p203 = pneg %p37
        %p204 = pneg %p61
        %p205 = pneg %p58
        %p206 = pneg %p82
        %p207 = pneg %p79
        %p208 = pneg %p103
        %p209 = pneg %p100
        %p210 = pneg %p124
        %p211 = pneg %p121
        %p212 = pneg %p150
        %p213 = pneg %p147
        %s214 = sand.u32 %s137, 1
        %s215 = scalar_lea.sflag [#allocation3], %s214
        %s216 = sand.u32 %s137, 1
        %s217 = smul.addr %s216, 8
        %s218 = scalar_lea.vmem [#allocation2], %s217
        %s219 = smul.u32 16, %s19
        %p220 = scmp.lt.s32.totalorder %s219, 31
        %s221 = scalar_select %p220, %s219, 31
        %s222 = smul.addr %s221, 8
        %s223 = scalar_lea.vmem %s0, %s222
        %s224 = smul.u32 16, %s19
        %v226 = vld [vmem:[%s223] sm:$0xff]
        %v227 = vld [vmem:[%s223 + $0x8] sm:$0xff]
        %v228 = vld [vmem:[%s223 + $0x10] sm:$0xff]
        %v229 = vld [vmem:[%s223 + $0x18] sm:$0xff]
        %v230 = vld [vmem:[%s223 + $0x20] sm:$0xff]
        %v231 = vld [vmem:[%s223 + $0x28] sm:$0xff]
        %v232 = vld [vmem:[%s223 + $0x30] sm:$0xff]
        %v233 = vld [vmem:[%s223 + $0x38] sm:$0xff]
        %v234 = vld [vmem:[%s223 + $0x40] sm:$0xff]
        %v235 = vld [vmem:[%s223 + $0x48] sm:$0xff]
        %v236 = vld [vmem:[%s223 + $0x50] sm:$0xff]
        %v237 = vld [vmem:[%s223 + $0x58] sm:$0xff]
        %v238 = vld [vmem:[%s223 + $0x60] sm:$0xff]
        %v239 = vld [vmem:[%s223 + $0x68] sm:$0xff]
        %v240 = vld [vmem:[%s223 + $0x70] sm:$0xff]
        %v241 = vld [vmem:[%s223 + $0x78] sm:$0xff]
        %v242 = vpack.c.bf16 %v227, %v226
        %v243 = vpack.c.bf16 %v229, %v228
        %v244 = vpack.c.bf16 %v231, %v230
        %v245 = vpack.c.bf16 %v233, %v232
        %v246 = vpack.c.bf16 %v235, %v234
        %v247 = vpack.c.bf16 %v237, %v236
        %v248 = vpack.c.bf16 %v239, %v238
        %v249 = vpack.c.bf16 %v241, %v240
        %v250 = vld [vmem:[%s2] sm:$0xf]
        %v251 = vld [vmem:[%s2 + $0x4] sm:$0xf]
        %v252 = vld [vmem:[%s2 + $0x8] sm:$0xf]
        %v253 = vld [vmem:[%s2 + $0xc] sm:$0xf]
        %v254 = vld [vmem:[%s1] sm:$0x1]
        %v255 = vperm.slane %v254, 0
        %v260 = vunpack.c.l.b16 %v250
        %v261 = vunpack.c.l.b16 %v251
        %v262 = vunpack.c.l.b16 %v252
        %v263 = vunpack.c.l.b16 %v253
        %v264 = vpack.c.b16 %v261, %v260
        %v265 = vpack.c.b16 %v263, %v262
        %vm268 = vcmask 261120
        %v270 = vsel %vm268, %v242, 0
        %v273 = vsel %vm268, %v243, 0
        %v276 = vsel %vm268, %v244, 0
        %v279 = vsel %vm268, %v245, 0
        %v282 = vsel %vm268, %v246, 0
        %v285 = vsel %vm268, %v247, 0
        %v288 = vsel %vm268, %v248, 0
        %v291 = vsel %vm268, %v249, 0
        %293 = vmatpush.bf16.msra.mxu0 0
        %294 = vmatpush.bf16.msra.mxu0 0
        %295 = vmatpush.bf16.msra.mxu0 0
        %296 = vmatpush.bf16.msra.mxu0 0
        %297 = vmatpush.bf16.msra.mxu0 0
        %298 = vmatpush.bf16.msra.mxu0 0
        %299 = vmatpush.bf16.msra.mxu0 %v265
        %300 = vmatpush.bf16.msra.mxu0 %v264
        %301 = vmatmul.bf16.gmra.mxu0 %v270
        %v302 = vpop.f32.mrf.mxu0
        %v303 = vadd.f32 %v255, %v302
        %v304 = vpop.f32.mrf.mxu0
        %v305 = vadd.f32 %v255, %v304
        %306 = vmatmul.bf16.gmra.mxu0 %v273
        %v307 = vpop.f32.mrf.mxu0
        %v308 = vadd.f32 %v255, %v307
        %v309 = vpop.f32.mrf.mxu0
        %v310 = vadd.f32 %v255, %v309
        %311 = vmatmul.bf16.gmra.mxu0 %v276
        %v312 = vpop.f32.mrf.mxu0
        %v313 = vadd.f32 %v255, %v312
        %v314 = vpop.f32.mrf.mxu0
        %v315 = vadd.f32 %v255, %v314
        %316 = vmatmul.bf16.gmra.mxu0 %v279
        %v317 = vpop.f32.mrf.mxu0
        %v318 = vadd.f32 %v255, %v317
        %v319 = vpop.f32.mrf.mxu0
        %v320 = vadd.f32 %v255, %v319
        %321 = vmatmul.bf16.gmra.mxu0 %v282
        %v322 = vpop.f32.mrf.mxu0
        %v323 = vadd.f32 %v255, %v322
        %v324 = vpop.f32.mrf.mxu0
        %v325 = vadd.f32 %v255, %v324
        %326 = vmatmul.bf16.gmra.mxu0 %v285
        %v327 = vpop.f32.mrf.mxu0
        %v328 = vadd.f32 %v255, %v327
        %v329 = vpop.f32.mrf.mxu0
        %v330 = vadd.f32 %v255, %v329
        %331 = vmatmul.bf16.gmra.mxu0 %v288
        %v332 = vpop.f32.mrf.mxu0
        %v333 = vadd.f32 %v255, %v332
        %v334 = vpop.f32.mrf.mxu0
        %v335 = vadd.f32 %v255, %v334
        %336 = vmatmul.bf16.gmra.mxu0 %v291
        %v337 = vpop.f32.mrf.mxu0
        %v338 = vadd.f32 %v255, %v337
        %v339 = vpop.f32.mrf.mxu0
        %v340 = vadd.f32 %v255, %v339
        %341 = vdwg.mxu0
        %v342 = vmax.f32 %v303, 0.0
        %v343 = vmax.f32 %v305, 0.0
        %v344 = vmax.f32 %v308, 0.0
        %v345 = vmax.f32 %v310, 0.0
        %v346 = vmax.f32 %v313, 0.0
        %v347 = vmax.f32 %v315, 0.0
        %v348 = vmax.f32 %v318, 0.0
        %v349 = vmax.f32 %v320, 0.0
        %v350 = vmax.f32 %v323, 0.0
        %v351 = vmax.f32 %v325, 0.0
        %v352 = vmax.f32 %v328, 0.0
        %v353 = vmax.f32 %v330, 0.0
        %v354 = vmax.f32 %v333, 0.0
        %v355 = vmax.f32 %v335, 0.0
        %v356 = vmax.f32 %v338, 0.0
        %v357 = vmax.f32 %v340, 0.0
        %v358 = vpack.c.bf16 %v343, %v342
        %v359 = vpack.c.bf16 %v345, %v344
        %v360 = vpack.c.bf16 %v347, %v346
        %v361 = vpack.c.bf16 %v349, %v348
        %v362 = vpack.c.bf16 %v351, %v350
        %v363 = vpack.c.bf16 %v353, %v352
        %v364 = vpack.c.bf16 %v355, %v354
        %v365 = vpack.c.bf16 %v357, %v356
        %v366 = vld [vmem:[%s3] sm:$0xf]
        %v367 = vld [vmem:[%s3 + $0x4] sm:$0xf]
        %v368 = vld [vmem:[%s3 + $0x8] sm:$0xf]
        %v369 = vld [vmem:[%s3 + $0xc] sm:$0xf]
        %v370 = vld [vmem:[%s3 + $0x10] sm:$0xf]
        %v371 = vld [vmem:[%s3 + $0x14] sm:$0xf]
        %v372 = vld [vmem:[%s3 + $0x18] sm:$0xf]
        %v373 = vld [vmem:[%s3 + $0x1c] sm:$0xf]
        %v374 = vld [vmem:[%s3 + $0x20] sm:$0xf]
        %v375 = vld [vmem:[%s3 + $0x24] sm:$0xf]
        %v376 = vld [vmem:[%s3 + $0x28] sm:$0xf]
        %v377 = vld [vmem:[%s3 + $0x2c] sm:$0xf]
        %v378 = vld [vmem:[%s3 + $0x30] sm:$0xf]
        %v379 = vld [vmem:[%s3 + $0x34] sm:$0xf]
        %v380 = vld [vmem:[%s3 + $0x38] sm:$0xf]
        %v381 = vld [vmem:[%s3 + $0x3c] sm:$0xf]
        %v382 = vld [vmem:[%s1 + $0x1] sm:$0x1]
        %v383 = vperm.slane %v382, 0
        %v400 = vunpack.c.l.b16 %v366
        %v401 = vunpack.c.l.b16 %v367
        %v402 = vunpack.c.l.b16 %v368
        %v403 = vunpack.c.l.b16 %v369
        %v404 = vunpack.c.l.b16 %v370
        %v405 = vunpack.c.l.b16 %v371
        %v406 = vunpack.c.l.b16 %v372
        %v407 = vunpack.c.l.b16 %v373
        %v408 = vunpack.c.l.b16 %v374
        %v409 = vunpack.c.l.b16 %v375
        %v410 = vunpack.c.l.b16 %v376
        %v411 = vunpack.c.l.b16 %v377
        %v412 = vunpack.c.l.b16 %v378
        %v413 = vunpack.c.l.b16 %v379
        %v414 = vunpack.c.l.b16 %v380
        %v415 = vunpack.c.l.b16 %v381
        %v416 = vpack.c.b16 %v401, %v400
        %v417 = vpack.c.b16 %v403, %v402
        %v418 = vpack.c.b16 %v405, %v404
        %v419 = vpack.c.b16 %v407, %v406
        %v420 = vpack.c.b16 %v409, %v408
        %v421 = vpack.c.b16 %v411, %v410
        %v422 = vpack.c.b16 %v413, %v412
        %v423 = vpack.c.b16 %v415, %v414
        %432 = vmatpush.bf16.msra.mxu0 %v423
        %433 = vmatpush.bf16.msra.mxu0 %v422
        %434 = vmatpush.bf16.msra.mxu0 %v421
        %435 = vmatpush.bf16.msra.mxu0 %v420
        %436 = vmatpush.bf16.msra.mxu0 %v419
        %437 = vmatpush.bf16.msra.mxu0 %v418
        %438 = vmatpush.bf16.msra.mxu0 %v417
        %439 = vmatpush.bf16.msra.mxu0 %v416
        %440 = vmatmul.bf16.gmra.mxu0 %v358
        %v441 = vpop.f32.mrf.mxu0
        %v442 = vadd.f32 %v383, %v441
        %v443 = vpop.f32.mrf.mxu0
        %v444 = vadd.f32 %v383, %v443
        %445 = vmatmul.bf16.gmra.mxu0 %v359
        %v446 = vpop.f32.mrf.mxu0
        %v447 = vadd.f32 %v383, %v446
        %v448 = vpop.f32.mrf.mxu0
        %v449 = vadd.f32 %v383, %v448
        %450 = vmatmul.bf16.gmra.mxu0 %v360
        %v451 = vpop.f32.mrf.mxu0
        %v452 = vadd.f32 %v383, %v451
        %v453 = vpop.f32.mrf.mxu0
        %v454 = vadd.f32 %v383, %v453
        %455 = vmatmul.bf16.gmra.mxu0 %v361
        %v456 = vpop.f32.mrf.mxu0
        %v457 = vadd.f32 %v383, %v456
        %v458 = vpop.f32.mrf.mxu0
        %v459 = vadd.f32 %v383, %v458
        %460 = vmatmul.bf16.gmra.mxu0 %v362
        %v461 = vpop.f32.mrf.mxu0
        %v462 = vadd.f32 %v383, %v461
        %v463 = vpop.f32.mrf.mxu0
        %v464 = vadd.f32 %v383, %v463
        %465 = vmatmul.bf16.gmra.mxu0 %v363
        %v466 = vpop.f32.mrf.mxu0
        %v467 = vadd.f32 %v383, %v466
        %v468 = vpop.f32.mrf.mxu0
        %v469 = vadd.f32 %v383, %v468
        %470 = vmatmul.bf16.gmra.mxu0 %v364
        %v471 = vpop.f32.mrf.mxu0
        %v472 = vadd.f32 %v383, %v471
        %v473 = vpop.f32.mrf.mxu0
        %v474 = vadd.f32 %v383, %v473
        %475 = vmatmul.bf16.gmra.mxu0 %v365
        %v476 = vpop.f32.mrf.mxu0
        %v477 = vadd.f32 %v383, %v476
        %v478 = vpop.f32.mrf.mxu0
        %v479 = vadd.f32 %v383, %v478
        %480 = vdwg.mxu0
        %v481 = vmax.f32 %v442, 0.0
        %v482 = vmax.f32 %v444, 0.0
        %v483 = vmax.f32 %v447, 0.0
        %v484 = vmax.f32 %v449, 0.0
        %v485 = vmax.f32 %v452, 0.0
        %v486 = vmax.f32 %v454, 0.0
        %v487 = vmax.f32 %v457, 0.0
        %v488 = vmax.f32 %v459, 0.0
        %v489 = vmax.f32 %v462, 0.0
        %v490 = vmax.f32 %v464, 0.0
        %v491 = vmax.f32 %v467, 0.0
        %v492 = vmax.f32 %v469, 0.0
        %v493 = vmax.f32 %v472, 0.0
        %v494 = vmax.f32 %v474, 0.0
        %v495 = vmax.f32 %v477, 0.0
        %v496 = vmax.f32 %v479, 0.0
        %v497 = vpack.c.bf16 %v482, %v481
        %v498 = vpack.c.bf16 %v484, %v483
        %v499 = vpack.c.bf16 %v486, %v485
        %v500 = vpack.c.bf16 %v488, %v487
        %v501 = vpack.c.bf16 %v490, %v489
        %v502 = vpack.c.bf16 %v492, %v491
        %v503 = vpack.c.bf16 %v494, %v493
        %v504 = vpack.c.bf16 %v496, %v495
        %v505 = vld [vmem:[%s4] sm:$0xf]
        %v506 = vld [vmem:[%s4 + $0x4] sm:$0xf]
        %v507 = vld [vmem:[%s4 + $0x8] sm:$0xf]
        %v508 = vld [vmem:[%s4 + $0xc] sm:$0xf]
        %v509 = vld [vmem:[%s4 + $0x10] sm:$0xf]
        %v510 = vld [vmem:[%s4 + $0x14] sm:$0xf]
        %v511 = vld [vmem:[%s4 + $0x18] sm:$0xf]
        %v512 = vld [vmem:[%s4 + $0x1c] sm:$0xf]
        %v513 = vld [vmem:[%s4 + $0x20] sm:$0xf]
        %v514 = vld [vmem:[%s4 + $0x24] sm:$0xf]
        %v515 = vld [vmem:[%s4 + $0x28] sm:$0xf]
        %v516 = vld [vmem:[%s4 + $0x2c] sm:$0xf]
        %v517 = vld [vmem:[%s4 + $0x30] sm:$0xf]
        %v518 = vld [vmem:[%s4 + $0x34] sm:$0xf]
        %v519 = vld [vmem:[%s4 + $0x38] sm:$0xf]
        %v520 = vld [vmem:[%s4 + $0x3c] sm:$0xf]
        %v521 = vld [vmem:[%s1 + $0x2] sm:$0x1]
        %v522 = vperm.slane %v521, 0
        %v539 = vunpack.c.l.b16 %v505
        %v540 = vunpack.c.l.b16 %v506
        %v541 = vunpack.c.l.b16 %v507
        %v542 = vunpack.c.l.b16 %v508
        %v543 = vunpack.c.l.b16 %v509
        %v544 = vunpack.c.l.b16 %v510
        %v545 = vunpack.c.l.b16 %v511
        %v546 = vunpack.c.l.b16 %v512
        %v547 = vunpack.c.l.b16 %v513
        %v548 = vunpack.c.l.b16 %v514
        %v549 = vunpack.c.l.b16 %v515
        %v550 = vunpack.c.l.b16 %v516
        %v551 = vunpack.c.l.b16 %v517
        %v552 = vunpack.c.l.b16 %v518
        %v553 = vunpack.c.l.b16 %v519
        %v554 = vunpack.c.l.b16 %v520
        %v555 = vpack.c.b16 %v540, %v539
        %v556 = vpack.c.b16 %v542, %v541
        %v557 = vpack.c.b16 %v544, %v543
        %v558 = vpack.c.b16 %v546, %v545
        %v559 = vpack.c.b16 %v548, %v547
        %v560 = vpack.c.b16 %v550, %v549
        %v561 = vpack.c.b16 %v552, %v551
        %v562 = vpack.c.b16 %v554, %v553
        %571 = vmatpush.bf16.msra.mxu0 %v562
        %572 = vmatpush.bf16.msra.mxu0 %v561
        %573 = vmatpush.bf16.msra.mxu0 %v560
        %574 = vmatpush.bf16.msra.mxu0 %v559
        %575 = vmatpush.bf16.msra.mxu0 %v558
        %576 = vmatpush.bf16.msra.mxu0 %v557
        %577 = vmatpush.bf16.msra.mxu0 %v556
        %578 = vmatpush.bf16.msra.mxu0 %v555
        %579 = vmatmul.bf16.gmra.mxu0 %v497
        %v580 = vpop.f32.mrf.mxu0
        %v581 = vadd.f32 %v522, %v580
        %v582 = vpop.f32.mrf.mxu0
        %v583 = vadd.f32 %v522, %v582
        %584 = vmatmul.bf16.gmra.mxu0 %v498
        %v585 = vpop.f32.mrf.mxu0
        %v586 = vadd.f32 %v522, %v585
        %v587 = vpop.f32.mrf.mxu0
        %v588 = vadd.f32 %v522, %v587
        %589 = vmatmul.bf16.gmra.mxu0 %v499
        %v590 = vpop.f32.mrf.mxu0
        %v591 = vadd.f32 %v522, %v590
        %v592 = vpop.f32.mrf.mxu0
        %v593 = vadd.f32 %v522, %v592
        %594 = vmatmul.bf16.gmra.mxu0 %v500
        %v595 = vpop.f32.mrf.mxu0
        %v596 = vadd.f32 %v522, %v595
        %v597 = vpop.f32.mrf.mxu0
        %v598 = vadd.f32 %v522, %v597
        %599 = vmatmul.bf16.gmra.mxu0 %v501
        %v600 = vpop.f32.mrf.mxu0
        %v601 = vadd.f32 %v522, %v600
        %v602 = vpop.f32.mrf.mxu0
        %v603 = vadd.f32 %v522, %v602
        %604 = vmatmul.bf16.gmra.mxu0 %v502
        %v605 = vpop.f32.mrf.mxu0
        %v606 = vadd.f32 %v522, %v605
        %v607 = vpop.f32.mrf.mxu0
        %v608 = vadd.f32 %v522, %v607
        %609 = vmatmul.bf16.gmra.mxu0 %v503
        %v610 = vpop.f32.mrf.mxu0
        %v611 = vadd.f32 %v522, %v610
        %v612 = vpop.f32.mrf.mxu0
        %v613 = vadd.f32 %v522, %v612
        %614 = vmatmul.bf16.gmra.mxu0 %v504
        %v615 = vpop.f32.mrf.mxu0
        %v616 = vadd.f32 %v522, %v615
        %v617 = vpop.f32.mrf.mxu0
        %v618 = vadd.f32 %v522, %v617
        %619 = vdwg.mxu0
        %620 = vxpose.xlu0.b32.start [1/16] %v581, 128
        %621 = vxpose.xlu0.b32.cont [2/16] %v583, 128
        %622 = vxpose.xlu0.b32.cont [3/16] %v586, 128
        %623 = vxpose.xlu0.b32.cont [4/16] %v588, 128
        %624 = vxpose.xlu0.b32.cont [5/16] %v591, 128
        %625 = vxpose.xlu0.b32.cont [6/16] %v593, 128
        %626 = vxpose.xlu0.b32.cont [7/16] %v596, 128
        %627 = vxpose.xlu0.b32.cont [8/16] %v598, 128
        %628 = vxpose.xlu0.b32.cont [9/16] %v601, 128
        %629 = vxpose.xlu0.b32.cont [10/16] %v603, 128
        %630 = vxpose.xlu0.b32.cont [11/16] %v606, 128
        %631 = vxpose.xlu0.b32.cont [12/16] %v608, 128
        %632 = vxpose.xlu0.b32.cont [13/16] %v611, 128
        %633 = vxpose.xlu0.b32.cont [14/16] %v613, 128
        %634 = vxpose.xlu0.b32.cont [15/16] %v616, 128
        %635 = vxpose.xlu0.b32.end [16/16] %v618, 128
        %v636 = vpop.trf.xlu0
        %v637 = vpop.trf.xlu0
        %v638 = vpop.trf.xlu0
        %v639 = vpop.trf.xlu0
        %v640 = vpop.trf.xlu0
        %v641 = vpop.trf.xlu0
        %v642 = vpop.trf.xlu0
        %v643 = vpop.trf.xlu0
        %v644 = vpop.trf.xlu0
        %v645 = vpop.trf.xlu0
        %v646 = vpop.trf.xlu0
        %v647 = vpop.trf.xlu0
        %v648 = vpop.trf.xlu0
        %v649 = vpop.trf.xlu0
        %v650 = vpop.trf.xlu0
        %v651 = vpop.trf.xlu0
        %652 = vst [vmem:[%s218] sm:$0xff] %v636
        %s653 = sand.u32 %s137, 1
        %s654 = scalar_lea.sflag [#allocation3], %s653
        %s655 = sand.u32 %s137, 1
        %s656 = smul.addr %s655, 8
        %s657 = scalar_lea.vmem [#allocation2], %s656
        // Predicated region
        $region41: #{tpu_custom_call.1} parent=39 // pred_check
          %p658 = pneg %p147
        $region42: #{tpu_custom_call.1} parent=39 // pred_check_branch
          %660 = sbr.rel (%p658) target = $region44
        $region43: #{tpu_custom_call.1} parent=39 // pred_region
          %662 = vsyncadd %s654, 0
          %s663 = smul.addr %s19, 8
          %s664 = scalar_lea.hbm %s5, %s663
          %s666 = sshll.u32 %s657, 4
          %s667 = int_to_ptr.vmem [resolvable:$true] %s666
          %s668 = sshll.u32 %s664, 4
          %s669 = int_to_ptr.hbm [resolvable:$true] %s668
          %671 = dma.vmem_to_hbm [thread:$0]  %s667, 128, %s669, %s654
        $region44: #{tpu_custom_call.1} parent=39 // pred_fallthru
          _
      $region40: #{tpu_custom_call.1} parent=5 // pred_fallthru
        _
      %p672 = scmp.le.s32.totalorder 2, %s14
      // Predicated region
      $region45: #{tpu_custom_call.1} parent=5 // pred_check
        %p673 = pneg %p672
      $region46: #{tpu_custom_call.1} parent=5 // pred_check_branch
        %675 = sbr.rel (%p673) target = $region48
      $region47: #{tpu_custom_call.1} parent=5 // pred_region
        %s676 = ssub.s32 %s14, 2
        // Predicated region
        $region49: #{tpu_custom_call.1} parent=47 // pred_check
          %p677 = pneg %p153
        $region50: #{tpu_custom_call.1} parent=47 // pred_check_branch
          %679 = sbr.rel (%p677) target = $region52
        $region51: #{tpu_custom_call.1} parent=47 // pred_region
          %s680 = sand.u32 %s138, 1
          %s681 = scalar_lea.sflag [#allocation3], %s680
          %s682 = sand.u32 %s138, 1
          %s683 = smul.addr %s682, 8
          %s684 = scalar_lea.vmem [#allocation2], %s683
          %686 = dma.done %s681, 128
        $region52: #{tpu_custom_call.1} parent=47 // pred_fallthru
          _
      $region48: #{tpu_custom_call.1} parent=5 // pred_fallthru
        _
    $region6: #{tpu_custom_call.1} parent=1 // loop_footer
      %s18 = sadd.s32 1, %s14
    $region7: #{tpu_custom_call.1} parent=1 // loop_footer_branch
      %13 = sbr.rel target = $region3
    $region8: #{tpu_custom_call.1} parent=1 // loop_exit
      _
    %687 = vsyncpa [#allocation3], 1
    %s688 = scalar_lea.sflag [#allocation3], 1
    %689 = vsyncpa %s688, 1

// kernel: tpu_custom_call.1
$region0: #{tpu_custom_call.1}
  #allocation0 [shape = 'u32[]', space=smem, size = 0x4, offset = 0x4, fixed_abs, tag = 'smem constant byte address 0x4 - core index']
  #allocation1 [shape = 'u32[72,128]{1,0:T(1,128)}', space=vmem, size = 0x9000, scoped, tag = 'internal scratch']
  %s0 = inlined_call_operand.vmem [shape: f32[256,32], index: 0, kind: input, shape index: {}]
  %s1 = inlined_call_operand.vmem [shape: f32[3,128], index: 1, kind: input, shape index: {}]
  %s2 = inlined_call_operand.vmem [shape: bf16[32,128], index: 2, kind: input, shape index: {}]
  %s3 = inlined_call_operand.vmem [shape: bf16[128,128], index: 3, kind: input, shape index: {}]
  %s4 = inlined_call_operand.vmem [shape: bf16[128,128], index: 4, kind: input, shape index: {}]
  %s5 = inlined_call_operand.hbm [shape: f32[8,256], index: 5, kind: output, shape index: {}]
  %s6 = sld [smem:[#allocation0]]
  $region53: #{tpu_custom_call.1} parent=0
    _
  %s8 = ssub.s32 1, %s6
  %s9 = scalar_select 0, %s8, %s6
  $region1: #{tpu_custom_call.1} parent=0
    #allocation2 [shape = 'u8[8192]{0}', space=vmem, size = 0x2000, scoped, tag = 'output window, operand 0']
    #allocation3 [shape = 's32[2]{0}', space=sflag, size = 0x8, scoped, tag = 'scoped memory for tpu_custom_call.1']
    %10 = vsyncpa [#allocation3], 0
    %s11 = scalar_lea.sflag [#allocation3], 1
    %12 = vsyncpa %s11, 0
    loop: start=0, step=1, limit=4
    $region2: #{tpu_custom_call.1} parent=1 // loop_pre_header
      _
    $region3: #{tpu_custom_call.1} parent=1 // loop_header
      %s14 = sphi 0, %s18
      %p15 = scmp.ge.s32.totalorder %s14, 4
      %s24 = sphi 0, %s26
      %s27 = sphi 0, %s24
      %s28 = sphi 0, %s27
      %s44 = sphi 0, %s28
      %s48 = sphi 0, %s48
      %s50 = sphi 0, %s48
      %s51 = sphi 0, %s50
      %s65 = sphi 0, %s51
      %s69 = sphi 0, %s69
      %s71 = sphi 0, %s69
      %s72 = sphi 0, %s71
      %s86 = sphi 0, %s72
      %s90 = sphi 0, %s90
      %s92 = sphi 0, %s90
      %s93 = sphi 0, %s92
      %s107 = sphi 0, %s93
      %s111 = sphi 0, %s111
      %s113 = sphi 0, %s111
      %s114 = sphi 0, %s113
      %s128 = sphi 0, %s114
      %s134 = sphi 0, %s136
      %s137 = sphi 0, %s134
      %s138 = sphi 0, %s137
      %s154 = sphi 0, %s138
    $region4: #{tpu_custom_call.1} parent=1 // loop_header_branch
      %17 = sbr.rel (%p15) target = $region8
    $region5: #{tpu_custom_call.1} parent=1 // loop_body
      %s19 = ssub.s32 %s14, 1
      %s20 = ssub.s32 %s14, 2
      %s21 = sadd.s32 %s14, 1
      %s22 = ssub.s32 %s14, %s21
      %p23 = scmp.eq.s32.totalorder %s22, 0
      %s25 = sadd.s32 %s24, 1
      %s26 = scalar_select %p23, %s24, %s25
      %p29 = pneg %p23
      %p30 = scmp.eq.s32.totalorder %s14, 1
      %p31 = por %p29, %p30
      %p32 = scmp.ne.s32.totalorder %s24, %s27
      %p33 = scmp.eq.s32.totalorder %s14, 0
      %p34 = por %p32, %p33
      %p35 = scmp.ne.s32.totalorder %s24, %s27
      %p36 = scmp.eq.s32.totalorder %s19, 1
      %p37 = por %p35, %p36
      %p38 = scmp.ne.s32.totalorder %s27, %s28
      %p39 = scmp.eq.s32.totalorder %s19, 0
      %p40 = por %p38, %p39
      %p41 = scmp.ne.s32.totalorder %s27, %s28
      %p42 = scmp.eq.s32.totalorder %s20, 1
      %p43 = por %p41, %p42
      %p45 = scmp.ne.s32.totalorder %s28, %s44
      %p46 = scmp.eq.s32.totalorder %s20, 0
      %p47 = por %p45, %p46
      %s49 = sadd.s32 %s48, 1
      %p52 = scmp.eq.s32.totalorder %s14, 1
      %p53 = scmp.ne.s32.totalorder %s48, %s50
      %p54 = scmp.eq.s32.totalorder %s14, 0
      %p55 = por %p53, %p54
      %p56 = scmp.ne.s32.totalorder %s48, %s50
      %p57 = scmp.eq.s32.totalorder %s19, 1
      %p58 = por %p56, %p57
      %p59 = scmp.ne.s32.totalorder %s50, %s51
      %p60 = scmp.eq.s32.totalorder %s19, 0
      %p61 = por %p59, %p60
      %p62 = scmp.ne.s32.totalorder %s50, %s51
      %p63 = scmp.eq.s32.totalorder %s20, 1
      %p64 = por %p62, %p63
      %p66 = scmp.ne.s32.totalorder %s51, %s65
      %p67 = scmp.eq.s32.totalorder %s20, 0
      %p68 = por %p66, %p67
      %s70 = sadd.s32 %s69, 1
      %p73 = scmp.eq.s32.totalorder %s14, 1
      %p74 = scmp.ne.s32.totalorder %s69, %s71
      %p75 = scmp.eq.s32.totalorder %s14, 0
      %p76 = por %p74, %p75
      %p77 = scmp.ne.s32.totalorder %s69, %s71
      %p78 = scmp.eq.s32.totalorder %s19, 1
      %p79 = por %p77, %p78
      %p80 = scmp.ne.s32.totalorder %s71, %s72
      %p81 = scmp.eq.s32.totalorder %s19, 0
      %p82 = por %p80, %p81
      %p83 = scmp.ne.s32.totalorder %s71, %s72
      %p84 = scmp.eq.s32.totalorder %s20, 1
      %p85 = por %p83, %p84
      %p87 = scmp.ne.s32.totalorder %s72, %s86
      %p88 = scmp.eq.s32.totalorder %s20, 0
      %p89 = por %p87, %p88
      %s91 = sadd.s32 %s90, 1
      %p94 = scmp.eq.s32.totalorder %s14, 1
      %p95 = scmp.ne.s32.totalorder %s90, %s92
      %p96 = scmp.eq.s32.totalorder %s14, 0
      %p97 = por %p95, %p96
      %p98 = scmp.ne.s32.totalorder %s90, %s92
      %p99 = scmp.eq.s32.totalorder %s19, 1
      %p100 = por %p98, %p99
      %p101 = scmp.ne.s32.totalorder %s92, %s93
      %p102 = scmp.eq.s32.totalorder %s19, 0
      %p103 = por %p101, %p102
      %p104 = scmp.ne.s32.totalorder %s92, %s93
      %p105 = scmp.eq.s32.totalorder %s20, 1
      %p106 = por %p104, %p105
      %p108 = scmp.ne.s32.totalorder %s93, %s107
      %p109 = scmp.eq.s32.totalorder %s20, 0
      %p110 = por %p108, %p109
      %s112 = sadd.s32 %s111, 1
      %p115 = scmp.eq.s32.totalorder %s14, 1
      %p116 = scmp.ne.s32.totalorder %s111, %s113
      %p117 = scmp.eq.s32.totalorder %s14, 0
      %p118 = por %p116, %p117
      %p119 = scmp.ne.s32.totalorder %s111, %s113
      %p120 = scmp.eq.s32.totalorder %s19, 1
      %p121 = por %p119, %p120
      %p122 = scmp.ne.s32.totalorder %s113, %s114
      %p123 = scmp.eq.s32.totalorder %s19, 0
      %p124 = por %p122, %p123
      %p125 = scmp.ne.s32.totalorder %s113, %s114
      %p126 = scmp.eq.s32.totalorder %s20, 1
      %p127 = por %p125, %p126
      %p129 = scmp.ne.s32.totalorder %s114, %s128
      %p130 = scmp.eq.s32.totalorder %s20, 0
      %p131 = por %p129, %p130
      %s132 = ssub.s32 %s14, %s21
      %p133 = scmp.eq.s32.totalorder %s132, 0
      %s135 = sadd.s32 %s134, 1
      %s136 = scalar_select %p133, %s134, %s135
      %p139 = pneg %p133
      %p140 = scmp.eq.s32.totalorder %s14, 1
      %p141 = por %p139, %p140
      %p142 = scmp.ne.s32.totalorder %s134, %s137
      %p143 = scmp.eq.s32.totalorder %s14, 0
      %p144 = por %p142, %p143
      %p145 = scmp.ne.s32.totalorder %s134, %s137
      %p146 = scmp.eq.s32.totalorder %s19, 1
      %p147 = por %p145, %p146
      %p148 = scmp.ne.s32.totalorder %s137, %s138
      %p149 = scmp.eq.s32.totalorder %s19, 0
      %p150 = por %p148, %p149
      %p151 = scmp.ne.s32.totalorder %s137, %s138
      %p152 = scmp.eq.s32.totalorder %s20, 1
      %p153 = por %p151, %p152
      %p155 = scmp.ne.s32.totalorder %s138, %s154
      %p156 = scmp.eq.s32.totalorder %s20, 0
      %p157 = por %p155, %p156
      %p158 = scmp.le.s32.totalorder 1, %s14
      %p159 = scmp.lt.s32.totalorder %s14, 3
      %p160 = pnand %p158, %p159
      %p161 = pneg %p160
      // Predicated region
      $region9: #{tpu_custom_call.1} parent=5 // pred_check
        _
      $region10: #{tpu_custom_call.1} parent=5 // pred_check_branch
        %163 = sbr.rel (%p160) target = $region12
      $region11: #{tpu_custom_call.1} parent=5 // pred_region
        %s164 = ssub.s32 %s14, 1
        // Predicated region
        $region13: #{tpu_custom_call.1} parent=11 // pred_check
          %p165 = pneg %p61
        $region14: #{tpu_custom_call.1} parent=11 // pred_check_branch
          %167 = sbr.rel (%p165) target = $region16
        $region15: #{tpu_custom_call.1} parent=11 // pred_region
          _
        $region16: #{tpu_custom_call.1} parent=11 // pred_fallthru
          _
        // Predicated region
        $region17: #{tpu_custom_call.1} parent=11 // pred_check
          %p168 = pneg %p82
        $region18: #{tpu_custom_call.1} parent=11 // pred_check_branch
          %170 = sbr.rel (%p168) target = $region20
        $region19: #{tpu_custom_call.1} parent=11 // pred_region
          _
        $region20: #{tpu_custom_call.1} parent=11 // pred_fallthru
          _
        // Predicated region
        $region21: #{tpu_custom_call.1} parent=11 // pred_check
          %p171 = pneg %p103
        $region22: #{tpu_custom_call.1} parent=11 // pred_check_branch
          %173 = sbr.rel (%p171) target = $region24
        $region23: #{tpu_custom_call.1} parent=11 // pred_region
          _
        $region24: #{tpu_custom_call.1} parent=11 // pred_fallthru
          _
        // Predicated region
        $region25: #{tpu_custom_call.1} parent=11 // pred_check
          %p174 = pneg %p124
        $region26: #{tpu_custom_call.1} parent=11 // pred_check_branch
          %176 = sbr.rel (%p174) target = $region28
        $region27: #{tpu_custom_call.1} parent=11 // pred_region
          _
        $region28: #{tpu_custom_call.1} parent=11 // pred_fallthru
          _
      $region12: #{tpu_custom_call.1} parent=5 // pred_fallthru
        _
      %p177 = scmp.lt.s32.totalorder %s14, 2
      // Predicated region
      $region29: #{tpu_custom_call.1} parent=5 // pred_check
        %p178 = pneg %p177
      $region30: #{tpu_custom_call.1} parent=5 // pred_check_branch
        %180 = sbr.rel (%p178) target = $region32
      $region31: #{tpu_custom_call.1} parent=5 // pred_region
        // Predicated region
        $region33: #{tpu_custom_call.1} parent=31 // pred_check
          %p181 = pneg %p34
        $region34: #{tpu_custom_call.1} parent=31 // pred_check_branch
          %183 = sbr.rel (%p181) target = $region36
        $region35: #{tpu_custom_call.1} parent=31 // pred_region
          %s184 = smul.u32 16, %s14
          %p185 = scmp.lt.s32.totalorder %s184, 31
          %s186 = scalar_select %p185, %s184, 31
          %s187 = smul.addr %s186, 8
          %s188 = scalar_lea.vmem %s0, %s187
          %s189 = smul.u32 16, %s14
        $region36: #{tpu_custom_call.1} parent=31 // pred_fallthru
          _
      $region32: #{tpu_custom_call.1} parent=5 // pred_fallthru
        _
      %p190 = scmp.le.s32.totalorder 1, %s14
      %p191 = scmp.lt.s32.totalorder %s14, 3
      %p192 = pnand %p190, %p191
      %p193 = pneg %p192
      // Predicated region
      $region37: #{tpu_custom_call.1} parent=5 // pred_check
        _
      $region38: #{tpu_custom_call.1} parent=5 // pred_check_branch
        %195 = sbr.rel (%p192) target = $region40
      $region39: #{tpu_custom_call.1} parent=5 // pred_region
        %s196 = ssub.s32 %s14, 1
        %s197 = smul.u32 16, %s19
        %p198 = scmp.lt.s32.totalorder %s197, 31
        %s199 = scalar_select %p198, %s197, 31
        %s200 = smul.addr %s199, 8
        %s201 = scalar_lea.vmem %s0, %s200
        %p202 = pneg %p40
        %p203 = pneg %p37
        %p204 = pneg %p61
        %p205 = pneg %p58
        %p206 = pneg %p82
        %p207 = pneg %p79
        %p208 = pneg %p103
        %p209 = pneg %p100
        %p210 = pneg %p124
        %p211 = pneg %p121
        %p212 = pneg %p150
        %p213 = pneg %p147
        %s214 = sand.u32 %s137, 1
        %s215 = scalar_lea.sflag [#allocation3], %s214
        %s216 = sand.u32 %s137, 1
        %s217 = smul.addr %s216, 8
        %s218 = scalar_lea.vmem [#allocation2], %s217
        %s219 = smul.u32 16, %s19
        %p220 = scmp.lt.s32.totalorder %s219, 31
        %s221 = scalar_select %p220, %s219, 31
        %s222 = smul.addr %s221, 8
        %s223 = scalar_lea.vmem %s0, %s222
        %s224 = smul.u32 16, %s19
        %v226 = vld [vmem:[%s223] sm:$0xff]
        %v227 = vld [vmem:[%s223 + $0x8] sm:$0xff]
        %v228 = vld [vmem:[%s223 + $0x10] sm:$0xff]
        %v229 = vld [vmem:[%s223 + $0x18] sm:$0xff]
        %v230 = vld [vmem:[%s223 + $0x20] sm:$0xff]
        %v231 = vld [vmem:[%s223 + $0x28] sm:$0xff]
        %v232 = vld [vmem:[%s223 + $0x30] sm:$0xff]
        %v233 = vld [vmem:[%s223 + $0x38] sm:$0xff]
        %v234 = vld [vmem:[%s223 + $0x40] sm:$0xff]
        %v235 = vld [vmem:[%s223 + $0x48] sm:$0xff]
        %v236 = vld [vmem:[%s223 + $0x50] sm:$0xff]
        %v237 = vld [vmem:[%s223 + $0x58] sm:$0xff]
        %v238 = vld [vmem:[%s223 + $0x60] sm:$0xff]
        %v239 = vld [vmem:[%s223 + $0x68] sm:$0xff]
        %v240 = vld [vmem:[%s223 + $0x70] sm:$0xff]
        %v241 = vld [vmem:[%s223 + $0x78] sm:$0xff]
        %v242 = vpack.c.bf16 %v227, %v226
        %v243 = vpack.c.bf16 %v229, %v228
        %v244 = vpack.c.bf16 %v231, %v230
        %v245 = vpack.c.bf16 %v233, %v232
        %v246 = vpack.c.bf16 %v235, %v234
        %v247 = vpack.c.bf16 %v237, %v236
        %v248 = vpack.c.bf16 %v239, %v238
        %v249 = vpack.c.bf16 %v241, %v240
        %v250 = vld [vmem:[%s2] sm:$0xf]
        %v251 = vld [vmem:[%s2 + $0x4] sm:$0xf]
        %v252 = vld [vmem:[%s2 + $0x8] sm:$0xf]
        %v253 = vld [vmem:[%s2 + $0xc] sm:$0xf]
        %v254 = vld [vmem:[%s1] sm:$0x1]
        %v255 = vperm.slane %v254, 0
        %v260 = vunpack.c.l.b16 %v250
        %v261 = vunpack.c.l.b16 %v251
        %v262 = vunpack.c.l.b16 %v252
        %v263 = vunpack.c.l.b16 %v253
        %v264 = vpack.c.b16 %v261, %v260
        %v265 = vpack.c.b16 %v263, %v262
        %vm268 = vcmask 261120
        %v270 = vsel %vm268, %v242, 0
        %v273 = vsel %vm268, %v243, 0
        %v276 = vsel %vm268, %v244, 0
        %v279 = vsel %vm268, %v245, 0
        %v282 = vsel %vm268, %v246, 0
        %v285 = vsel %vm268, %v247, 0
        %v288 = vsel %vm268, %v248, 0
        %v291 = vsel %vm268, %v249, 0
        %293 = vmatpush.bf16.msra.mxu0 0
        %294 = vmatpush.bf16.msra.mxu0 0
        %295 = vmatpush.bf16.msra.mxu0 0
        %296 = vmatpush.bf16.msra.mxu0 0
        %297 = vmatpush.bf16.msra.mxu0 0
        %298 = vmatpush.bf16.msra.mxu0 0
        %299 = vmatpush.bf16.msra.mxu0 %v265
        %300 = vmatpush.bf16.msra.mxu0 %v264
        %301 = vmatmul.bf16.gmra.mxu0 %v270
        %v302 = vpop.f32.mrf.mxu0
        %v303 = vadd.f32 %v255, %v302
        %v304 = vpop.f32.mrf.mxu0
        %v305 = vadd.f32 %v255, %v304
        %306 = vmatmul.bf16.gmra.mxu0 %v273
        %v307 = vpop.f32.mrf.mxu0
        %v308 = vadd.f32 %v255, %v307
        %v309 = vpop.f32.mrf.mxu0
        %v310 = vadd.f32 %v255, %v309
        %311 = vmatmul.bf16.gmra.mxu0 %v276
        %v312 = vpop.f32.mrf.mxu0
        %v313 = vadd.f32 %v255, %v312
        %v314 = vpop.f32.mrf.mxu0
        %v315 = vadd.f32 %v255, %v314
        %316 = vmatmul.bf16.gmra.mxu0 %v279
        %v317 = vpop.f32.mrf.mxu0
        %v318 = vadd.f32 %v255, %v317
        %v319 = vpop.f32.mrf.mxu0
        %v320 = vadd.f32 %v255, %v319
        %321 = vmatmul.bf16.gmra.mxu0 %v282
        %v322 = vpop.f32.mrf.mxu0
        %v323 = vadd.f32 %v255, %v322
        %v324 = vpop.f32.mrf.mxu0
        %v325 = vadd.f32 %v255, %v324
        %326 = vmatmul.bf16.gmra.mxu0 %v285
        %v327 = vpop.f32.mrf.mxu0
        %v328 = vadd.f32 %v255, %v327
        %v329 = vpop.f32.mrf.mxu0
        %v330 = vadd.f32 %v255, %v329
        %331 = vmatmul.bf16.gmra.mxu0 %v288
        %v332 = vpop.f32.mrf.mxu0
        %v333 = vadd.f32 %v255, %v332
        %v334 = vpop.f32.mrf.mxu0
        %v335 = vadd.f32 %v255, %v334
        %336 = vmatmul.bf16.gmra.mxu0 %v291
        %v337 = vpop.f32.mrf.mxu0
        %v338 = vadd.f32 %v255, %v337
        %v339 = vpop.f32.mrf.mxu0
        %v340 = vadd.f32 %v255, %v339
        %341 = vdwg.mxu0
        %v342 = vmax.f32 %v303, 0.0
        %v343 = vmax.f32 %v305, 0.0
        %v344 = vmax.f32 %v308, 0.0
        %v345 = vmax.f32 %v310, 0.0
        %v346 = vmax.f32 %v313, 0.0
        %v347 = vmax.f32 %v315, 0.0
        %v348 = vmax.f32 %v318, 0.0
        %v349 = vmax.f32 %v320, 0.0
        %v350 = vmax.f32 %v323, 0.0
        %v351 = vmax.f32 %v325, 0.0
        %v352 = vmax.f32 %v328, 0.0
        %v353 = vmax.f32 %v330, 0.0
        %v354 = vmax.f32 %v333, 0.0
        %v355 = vmax.f32 %v335, 0.0
        %v356 = vmax.f32 %v338, 0.0
        %v357 = vmax.f32 %v340, 0.0
        %v358 = vpack.c.bf16 %v343, %v342
        %v359 = vpack.c.bf16 %v345, %v344
        %v360 = vpack.c.bf16 %v347, %v346
        %v361 = vpack.c.bf16 %v349, %v348
        %v362 = vpack.c.bf16 %v351, %v350
        %v363 = vpack.c.bf16 %v353, %v352
        %v364 = vpack.c.bf16 %v355, %v354
        %v365 = vpack.c.bf16 %v357, %v356
        %v366 = vld [vmem:[%s3] sm:$0xf]
        %v367 = vld [vmem:[%s3 + $0x4] sm:$0xf]
        %v368 = vld [vmem:[%s3 + $0x8] sm:$0xf]
        %v369 = vld [vmem:[%s3 + $0xc] sm:$0xf]
        %v370 = vld [vmem:[%s3 + $0x10] sm:$0xf]
        %v371 = vld [vmem:[%s3 + $0x14] sm:$0xf]
        %v372 = vld [vmem:[%s3 + $0x18] sm:$0xf]
        %v373 = vld [vmem:[%s3 + $0x1c] sm:$0xf]
        %v374 = vld [vmem:[%s3 + $0x20] sm:$0xf]
        %v375 = vld [vmem:[%s3 + $0x24] sm:$0xf]
        %v376 = vld [vmem:[%s3 + $0x28] sm:$0xf]
        %v377 = vld [vmem:[%s3 + $0x2c] sm:$0xf]
        %v378 = vld [vmem:[%s3 + $0x30] sm:$0xf]
        %v379 = vld [vmem:[%s3 + $0x34] sm:$0xf]
        %v380 = vld [vmem:[%s3 + $0x38] sm:$0xf]
        %v381 = vld [vmem:[%s3 + $0x3c] sm:$0xf]
        %v382 = vld [vmem:[%s1 + $0x1] sm:$0x1]
        %v383 = vperm.slane %v382, 0
        %v400 = vunpack.c.l.b16 %v366
        %v401 = vunpack.c.l.b16 %v367
        %v402 = vunpack.c.l.b16 %v368
        %v403 = vunpack.c.l.b16 %v369
        %v404 = vunpack.c.l.b16 %v370
        %v405 = vunpack.c.l.b16 %v371
        %v406 = vunpack.c.l.b16 %v372
        %v407 = vunpack.c.l.b16 %v373
        %v408 = vunpack.c.l.b16 %v374
        %v409 = vunpack.c.l.b16 %v375
        %v410 = vunpack.c.l.b16 %v376
        %v411 = vunpack.c.l.b16 %v377
        %v412 = vunpack.c.l.b16 %v378
        %v413 = vunpack.c.l.b16 %v379
        %v414 = vunpack.c.l.b16 %v380
        %v415 = vunpack.c.l.b16 %v381
        %v416 = vpack.c.b16 %v401, %v400
        %v417 = vpack.c.b16 %v403, %v402
        %v418 = vpack.c.b16 %v405, %v404
        %v419 = vpack.c.b16 %v407, %v406
        %v420 = vpack.c.b16 %v409, %v408
        %v421 = vpack.c.b16 %v411, %v410
        %v422 = vpack.c.b16 %v413, %v412
        %v423 = vpack.c.b16 %v415, %v414
        %432 = vmatpush.bf16.msra.mxu0 %v423
        %433 = vmatpush.bf16.msra.mxu0 %v422
        %434 = vmatpush.bf16.msra.mxu0 %v421
        %435 = vmatpush.bf16.msra.mxu0 %v420
        %436 = vmatpush.bf16.msra.mxu0 %v419
        %437 = vmatpush.bf16.msra.mxu0 %v418
        %438 = vmatpush.bf16.msra.mxu0 %v417
        %439 = vmatpush.bf16.msra.mxu0 %v416
        %440 = vmatmul.bf16.gmra.mxu0 %v358
        %v441 = vpop.f32.mrf.mxu0
        %v442 = vadd.f32 %v383, %v441
        %v443 = vpop.f32.mrf.mxu0
        %v444 = vadd.f32 %v383, %v443
        %445 = vmatmul.bf16.gmra.mxu0 %v359
        %v446 = vpop.f32.mrf.mxu0
        %v447 = vadd.f32 %v383, %v446
        %v448 = vpop.f32.mrf.mxu0
        %v449 = vadd.f32 %v383, %v448
        %450 = vmatmul.bf16.gmra.mxu0 %v360
        %v451 = vpop.f32.mrf.mxu0
        %v452 = vadd.f32 %v383, %v451
        %v453 = vpop.f32.mrf.mxu0
        %v454 = vadd.f32 %v383, %v453
        %455 = vmatmul.bf16.gmra.mxu0 %v361
        %v456 = vpop.f32.mrf.mxu0
        %v457 = vadd.f32 %v383, %v456
        %v458 = vpop.f32.mrf.mxu0
        %v459 = vadd.f32 %v383, %v458
        %460 = vmatmul.bf16.gmra.mxu0 %v362
        %v461 = vpop.f32.mrf.mxu0
        %v462 = vadd.f32 %v383, %v461
        %v463 = vpop.f32.mrf.mxu0
        %v464 = vadd.f32 %v383, %v463
        %465 = vmatmul.bf16.gmra.mxu0 %v363
        %v466 = vpop.f32.mrf.mxu0
        %v467 = vadd.f32 %v383, %v466
        %v468 = vpop.f32.mrf.mxu0
        %v469 = vadd.f32 %v383, %v468
        %470 = vmatmul.bf16.gmra.mxu0 %v364
        %v471 = vpop.f32.mrf.mxu0
        %v472 = vadd.f32 %v383, %v471
        %v473 = vpop.f32.mrf.mxu0
        %v474 = vadd.f32 %v383, %v473
        %475 = vmatmul.bf16.gmra.mxu0 %v365
        %v476 = vpop.f32.mrf.mxu0
        %v477 = vadd.f32 %v383, %v476
        %v478 = vpop.f32.mrf.mxu0
        %v479 = vadd.f32 %v383, %v478
        %480 = vdwg.mxu0
        %v481 = vmax.f32 %v442, 0.0
        %v482 = vmax.f32 %v444, 0.0
        %v483 = vmax.f32 %v447, 0.0
        %v484 = vmax.f32 %v449, 0.0
        %v485 = vmax.f32 %v452, 0.0
        %v486 = vmax.f32 %v454, 0.0
        %v487 = vmax.f32 %v457, 0.0
        %v488 = vmax.f32 %v459, 0.0
        %v489 = vmax.f32 %v462, 0.0
        %v490 = vmax.f32 %v464, 0.0
        %v491 = vmax.f32 %v467, 0.0
        %v492 = vmax.f32 %v469, 0.0
        %v493 = vmax.f32 %v472, 0.0
        %v494 = vmax.f32 %v474, 0.0
        %v495 = vmax.f32 %v477, 0.0
        %v496 = vmax.f32 %v479, 0.0
        %v497 = vpack.c.bf16 %v482, %v481
        %v498 = vpack.c.bf16 %v484, %v483
        %v499 = vpack.c.bf16 %v486, %v485
        %v500 = vpack.c.bf16 %v488, %v487
        %v501 = vpack.c.bf16 %v490, %v489
        %v502 = vpack.c.bf16 %v492, %v491
        %v503 = vpack.c.bf16 %v494, %v493
        %v504 = vpack.c.bf16 %v496, %v495
        %v505 = vld [vmem:[%s4] sm:$0xf]
        %v506 = vld [vmem:[%s4 + $0x4] sm:$0xf]
        %v507 = vld [vmem:[%s4 + $0x8] sm:$0xf]
        %v508 = vld [vmem:[%s4 + $0xc] sm:$0xf]
        %v509 = vld [vmem:[%s4 + $0x10] sm:$0xf]
        %v510 = vld [vmem:[%s4 + $0x14] sm:$0xf]
        %v511 = vld [vmem:[%s4 + $0x18] sm:$0xf]
        %v512 = vld [vmem:[%s4 + $0x1c] sm:$0xf]
        %v513 = vld [vmem:[%s4 + $0x20] sm:$0xf]
        %v514 = vld [vmem:[%s4 + $0x24] sm:$0xf]
        %v515 = vld [vmem:[%s4 + $0x28] sm:$0xf]
        %v516 = vld [vmem:[%s4 + $0x2c] sm:$0xf]
        %v517 = vld [vmem:[%s4 + $0x30] sm:$0xf]
        %v518 = vld [vmem:[%s4 + $0x34] sm:$0xf]
        %v519 = vld [vmem:[%s4 + $0x38] sm:$0xf]
        %v520 = vld [vmem:[%s4 + $0x3c] sm:$0xf]
        %v521 = vld [vmem:[%s1 + $0x2] sm:$0x1]
        %v522 = vperm.slane %v521, 0
        %v539 = vunpack.c.l.b16 %v505
        %v540 = vunpack.c.l.b16 %v506
        %v541 = vunpack.c.l.b16 %v507
        %v542 = vunpack.c.l.b16 %v508
        %v543 = vunpack.c.l.b16 %v509
        %v544 = vunpack.c.l.b16 %v510
        %v545 = vunpack.c.l.b16 %v511
        %v546 = vunpack.c.l.b16 %v512
        %v547 = vunpack.c.l.b16 %v513
        %v548 = vunpack.c.l.b16 %v514
        %v549 = vunpack.c.l.b16 %v515
        %v550 = vunpack.c.l.b16 %v516
        %v551 = vunpack.c.l.b16 %v517
        %v552 = vunpack.c.l.b16 %v518
        %v553 = vunpack.c.l.b16 %v519
        %v554 = vunpack.c.l.b16 %v520
        %v555 = vpack.c.b16 %v540, %v539
        %v556 = vpack.c.b16 %v542, %v541
        %v557 = vpack.c.b16 %v544, %v543
        %v558 = vpack.c.b16 %v546, %v545
        %v559 = vpack.c.b16 %v548, %v547
        %v560 = vpack.c.b16 %v550, %v549
        %v561 = vpack.c.b16 %v552, %v551
        %v562 = vpack.c.b16 %v554, %v553
        %571 = vmatpush.bf16.msra.mxu0 %v562
        %572 = vmatpush.bf16.msra.mxu0 %v561
        %573 = vmatpush.bf16.msra.mxu0 %v560
        %574 = vmatpush.bf16.msra.mxu0 %v559
        %575 = vmatpush.bf16.msra.mxu0 %v558
        %576 = vmatpush.bf16.msra.mxu0 %v557
        %577 = vmatpush.bf16.msra.mxu0 %v556
        %578 = vmatpush.bf16.msra.mxu0 %v555
        %579 = vmatmul.bf16.gmra.mxu0 %v497
        %v580 = vpop.f32.mrf.mxu0
        %v581 = vadd.f32 %v522, %v580
        %v582 = vpop.f32.mrf.mxu0
        %v583 = vadd.f32 %v522, %v582
        %584 = vmatmul.bf16.gmra.mxu0 %v498
        %v585 = vpop.f32.mrf.mxu0
        %v586 = vadd.f32 %v522, %v585
        %v587 = vpop.f32.mrf.mxu0
        %v588 = vadd.f32 %v522, %v587
        %589 = vmatmul.bf16.gmra.mxu0 %v499
        %v590 = vpop.f32.mrf.mxu0
        %v591 = vadd.f32 %v522, %v590
        %v592 = vpop.f32.mrf.mxu0
        %v593 = vadd.f32 %v522, %v592
        %594 = vmatmul.bf16.gmra.mxu0 %v500
        %v595 = vpop.f32.mrf.mxu0
        %v596 = vadd.f32 %v522, %v595
        %v597 = vpop.f32.mrf.mxu0
        %v598 = vadd.f32 %v522, %v597
        %599 = vmatmul.bf16.gmra.mxu0 %v501
        %v600 = vpop.f32.mrf.mxu0
        %v601 = vadd.f32 %v522, %v600
        %v602 = vpop.f32.mrf.mxu0
        %v603 = vadd.f32 %v522, %v602
        %604 = vmatmul.bf16.gmra.mxu0 %v502
        %v605 = vpop.f32.mrf.mxu0
        %v606 = vadd.f32 %v522, %v605
        %v607 = vpop.f32.mrf.mxu0
        %v608 = vadd.f32 %v522, %v607
        %609 = vmatmul.bf16.gmra.mxu0 %v503
        %v610 = vpop.f32.mrf.mxu0
        %v611 = vadd.f32 %v522, %v610
        %v612 = vpop.f32.mrf.mxu0
        %v613 = vadd.f32 %v522, %v612
        %614 = vmatmul.bf16.gmra.mxu0 %v504
        %v615 = vpop.f32.mrf.mxu0
        %v616 = vadd.f32 %v522, %v615
        %v617 = vpop.f32.mrf.mxu0
        %v618 = vadd.f32 %v522, %v617
        %619 = vdwg.mxu0
        %620 = vxpose.xlu0.b32.start [1/16] %v581, 128
        %621 = vxpose.xlu0.b32.cont [2/16] %v583, 128
        %622 = vxpose.xlu0.b32.cont [3/16] %v586, 128
        %623 = vxpose.xlu0.b32.cont [4/16] %v588, 128
        %624 = vxpose.xlu0.b32.cont [5/16] %v591, 128
        %625 = vxpose.xlu0.b32.cont [6/16] %v593, 128
        %626 = vxpose.xlu0.b32.cont [7/16] %v596, 128
        %627 = vxpose.xlu0.b32.cont [8/16] %v598, 128
        %628 = vxpose.xlu0.b32.cont [9/16] %v601, 128
        %629 = vxpose.xlu0.b32.cont [10/16] %v603, 128
        %630 = vxpose.xlu0.b32.cont [11/16] %v606, 128
        %631 = vxpose.xlu0.b32.cont [12/16] %v608, 128
        %632 = vxpose.xlu0.b32.cont [13/16] %v611, 128
        %633 = vxpose.xlu0.b32.cont [14/16] %v613, 128
        %634 = vxpose.xlu0.b32.cont [15/16] %v616, 128
        %635 = vxpose.xlu0.b32.end [16/16] %v618, 128
        %v636 = vpop.trf.xlu0
        %v637 = vpop.trf.xlu0
        %v638 = vpop.trf.xlu0
        %v639 = vpop.trf.xlu0
        %v640 = vpop.trf.xlu0
        %v641 = vpop.trf.xlu0
        %v642 = vpop.trf.xlu0
        %v643 = vpop.trf.xlu0
        %v644 = vpop.trf.xlu0
        %v645 = vpop.trf.xlu0
        %v646 = vpop.trf.xlu0
        %v647 = vpop.trf.xlu0
        %v648 = vpop.trf.xlu0
        %v649 = vpop.trf.xlu0
        %v650 = vpop.trf.xlu0
        %v651 = vpop.trf.xlu0
        %652 = vst [vmem:[%s218] sm:$0xff] %v636
        %s653 = sand.u32 %s137, 1
        %s654 = scalar_lea.sflag [#allocation3], %s653
        %s655 = sand.u32 %s137, 1
        %s656 = smul.addr %s655, 8
        %s657 = scalar_lea.vmem [#allocation2], %s656
        // Predicated region
        $region41: #{tpu_custom_call.1} parent=39 // pred_check
          %p658 = pneg %p147
        $region42: #{tpu_custom_call.1} parent=39 // pred_check_branch
          %660 = sbr.rel (%p658) target = $region44
        $region43: #{tpu_custom_call.1} parent=39 // pred_region
          %662 = vsyncadd %s654, 0
          %s663 = smul.addr %s19, 8
          %s664 = scalar_lea.hbm %s5, %s663
          %s666 = sshll.u32 %s657, 4
          %s667 = int_to_ptr.vmem [resolvable:$true] %s666
          %s668 = sshll.u32 %s664, 4
          %s669 = int_to_ptr.hbm [resolvable:$true] %s668
          %671 = dma.vmem_to_hbm [thread:$0]  %s667, 128, %s669, %s654
        $region44: #{tpu_custom_call.1} parent=39 // pred_fallthru
          _
      $region40: #{tpu_custom_call.1} parent=5 // pred_fallthru
        _
      %p672 = scmp.le.s32.totalorder 2, %s14
      // Predicated region
      $region45: #{tpu_custom_call.1} parent=5 // pred_check
        %p673 = pneg %p672
      $region46: #{tpu_custom_call.1} parent=5 // pred_check_branch
        %675 = sbr.rel (%p673) target = $region48
      $region47: #{tpu_custom_call.1} parent=5 // pred_region
        %s676 = ssub.s32 %s14, 2
        // Predicated region
        $region49: #{tpu_custom_call.1} parent=47 // pred_check
          %p677 = pneg %p153
        $region50: #{tpu_custom_call.1} parent=47 // pred_check_branch
          %679 = sbr.rel (%p677) target = $region52
        $region51: #{tpu_custom_call.1} parent=47 // pred_region
          %s680 = sand.u32 %s138, 1
          %s681 = scalar_lea.sflag [#allocation3], %s680
          %s682 = sand.u32 %s138, 1
          %s683 = smul.addr %s682, 8
          %s684 = scalar_lea.vmem [#allocation2], %s683
          %686 = dma.done %s681, 128
        $region52: #{tpu_custom_call.1} parent=47 // pred_fallthru
          _
      $region48: #{tpu_custom_call.1} parent=5 // pred_fallthru
        _
    $region6: #{tpu_custom_call.1} parent=1 // loop_footer
      %s18 = sadd.s32 1, %s14
    $region7: #{tpu_custom_call.1} parent=1 // loop_footer_branch
      %13 = sbr.rel target = $region3
    $region8: #{tpu_custom_call.1} parent=1 // loop_exit
      _
    %687 = vsyncpa [#allocation3], 1
    %s688 = scalar_lea.sflag [#allocation3], 1
    %689 = vsyncpa %s688, 1

</llo_original>
